<compile_context>
chip_gen: v6e
topology: v6e:2x2x1
jax: 0.10.0
libtpu: 0.0.40
codegen_flags: <defaults>
</compile_context>

<pallas_src>
import jax
import jax.numpy as jnp
from jax import lax
from jax.experimental import pallas as pl
from jax.experimental.pallas import tpu as pltpu


# ----------------------------------------------------------------------------
# Config (small synthetic sizes consistent with the module's forward)
# ----------------------------------------------------------------------------
VOCAB = 50
PAD_INDEX = 0
E = 32        # word_embedding_size
H = 32        # lstm_hidden_size
D_IMG = 64    # img_feature_size
B = 2         # batch
RND = 4       # dialog rounds (history)
T_Q = 8       # max question length
T_H = 8       # max history length
R = 8         # number of image regions

_VMEM = pl.BlockSpec(memory_space=pltpu.MemorySpace.VMEM)
_SMEM = pl.BlockSpec(memory_space=pltpu.MemorySpace.SMEM)


# ----------------------------------------------------------------------------
# Fused kernel: merged block-diagonal LSTM recurrence + attention + fusion
# ----------------------------------------------------------------------------
def hciae_fused_kernel(
    emb_ref, lens_ref, img_ref,
    wih_ref, brows_ref, whh_ref,
    wqh_stack_ref, bq_pack_ref, bh1_ref, bh2_ref, wqh1_ref,
    wimg_ref, bi2_ref, wall2_ref, bfus_ref,
    bsel_his_ref, bselT_his_ref, bsel_img_ref, bselT_img_ref,
    bqh1_ref, ball2_ref,
    out_ref,
):
    f32 = jnp.float32
    t_max, n, e2 = emb_ref.shape          # [T, N_pad, 2E] time-major, block-diag features
    g4 = wih_ref.shape[1]                 # 4H (one full 128-lane vreg)
    hid = g4 // 4
    b = bselT_his_ref.shape[0]            # batch
    nq = b                                # question rows
    nh = bselT_his_ref.shape[1]           # history rows (B*RND)
    nr = bselT_img_ref.shape[1]           # image rows   (B*R)

    # ---------------- LSTM section ----------------
    # Hoisted, time-major input projection (single matmul, off the serial path).
    # W_ih / bias already carry the 0.5 i/f/o pre-scale for the single-tanh trick.
    xg = (jnp.dot(emb_ref[...].reshape(t_max * n, e2), wih_ref[...],
                  preferred_element_type=f32).reshape(t_max, n, g4)
          + brows_ref[...][None, :, :])                                   # [T, N, 4H]

    lens = lens_ref[...]                                                  # [N, 1] int32
    whh = whh_ref[...]                                                    # [H, 8H] = [Whh_q | Whh_h] (lane-packed, pre-scaled)

    lane = lax.broadcasted_iota(jnp.int32, (n, g4), 1)
    tanh_lanes = (lane >= 2 * hid) & (lane < 3 * hid)                     # g-gate lanes
    isq_g4 = lax.broadcasted_iota(jnp.int32, (n, g4), 0) < nq             # question rows mask [N, 4H]
    isq_h = lax.broadcasted_iota(jnp.int32, (n, hid), 0) < nq             # question rows mask [N, H]

    h = jnp.zeros((n, hid), f32)
    c = jnp.zeros((n, hid), f32)
    h_out = jnp.zeros((n, hid), f32)

    # Fully unrolled recurrence (T is static and small; vreg pressure is tiny at
    # N_pad=16, so a static Python loop is fine).  Per serial step: one
    # [N,H]@[H,8H] MXU push, one 128-lane select, ONE tanh pass, gate combine.
    # TODO(synk): on v7x the xg[t] add could fold into an MRB accumulator; keep this form on v5e/v6e.
    # TODO(synk): hold whh MXU-resident via pltpu.matmul_push_rhs if the bundle dump shows per-step weight re-pushes.
    for t in range(t_max):
        gg = jnp.dot(h, whh, preferred_element_type=f32)                  # [N, 8H]
        gates = xg[t] + jnp.where(isq_g4, gg[:, 0:g4], gg[:, g4:2 * g4])  # row-wise block-diag select
        th = jnp.tanh(gates)                                              # single EUP pass
        act = jnp.where(tanh_lanes, th, 0.5 * th + 0.5)                   # sigmoid(x) = 0.5*tanh(x/2)+0.5
        i_g = act[:, 0:hid]
        f_g = act[:, hid:2 * hid]
        g_g = act[:, 2 * hid:3 * hid]
        o_g = act[:, 3 * hid:4 * hid]
        c = f_g * c + i_g * g_g
        h = o_g * jnp.tanh(c)
        h_out = jnp.where(lens == (t + 1), h, h_out)                      # latch h at t = len-1

    # ---------------- attention + fusion epilogue (all 2-D, lane-packed) ----------------
    # Merged question/history projection: block-diag LHS x stacked [2H, 3H] weights.
    h_out_pad = jnp.concatenate(
        [jnp.where(isq_h, h_out, 0.0), jnp.where(isq_h, 0.0, h_out)], axis=-1)     # [N, 2H]
    proj = jnp.dot(h_out_pad, wqh_stack_ref[...], preferred_element_type=f32)      # [N, 3H]
    qproj = proj[0:nq, :] + bq_pack_ref[...]         # [B, 3H]      = [q@Wq1+b | q@Wq2+b | q@Wf_q]
    hisproj = proj[nq:nq + nh, :]                    # [B*RND, 3H]  = [h@Wh1   | h@Wh2   | h@Wf_h]
    q1 = qproj[:, 0:hid]
    q2 = qproj[:, hid:2 * hid]
    fq = qproj[:, 2 * hid:3 * hid]

    imgproj = jnp.dot(img_ref[...], wimg_ref[...],
                      preferred_element_type=f32)    # [B*R, 2H] = [img@Wi2 | img@Wf_i]

    # ---- ques_att_on_his (flat rows + tiny selector matmuls; no sub-tile 3-D reshapes) ----
    h1 = hisproj[:, 0:hid] + bh1_ref[...]                                           # [B*RND, H]
    q1_rows = jnp.dot(bsel_his_ref[...], q1, preferred_element_type=f32)            # q1 broadcast to his rows
    s1 = jnp.tanh(h1 + q1_rows)
    score1 = jnp.sum(s1 * wqh1_ref[...], axis=-1, keepdims=True) + bqh1_ref[0, 0]   # [B*RND, 1]
    e1 = jnp.exp(score1 - jnp.max(score1, keepdims=True))    # global shift; per-group softmax is shift-invariant
    num1 = jnp.dot(bselT_his_ref[...], e1 * hisproj[:, hid:3 * hid],
                   preferred_element_type=f32)               # [B, 2H] = sum_r e_r * [h_r@Wh2 | h_r@Wf_h]
    den1 = jnp.dot(bselT_his_ref[...], jnp.broadcast_to(e1, (nh, hid)),
                   preferred_element_type=f32)               # [B, H], every lane = group sum
    inv1 = 1.0 / den1
    h2 = num1[:, 0:hid] * inv1 + bh2_ref[...]                # Wh2(att_his) + b   (linearity of weighted sum)
    fh = num1[:, hid:2 * hid] * inv1                         # att_his @ Wf_h

    # ---- qh_att_on_img ----
    i2 = imgproj[:, 0:hid] + bi2_ref[...]                                            # [B*R, H]
    q2h_rows = jnp.dot(bsel_img_ref[...], q2 + h2, preferred_element_type=f32)       # broadcast to img rows
    s2 = jnp.tanh(i2 + q2h_rows)
    score2 = jnp.sum(s2 * wall2_ref[...], axis=-1, keepdims=True) + ball2_ref[0, 0]  # [B*R, 1]
    e2 = jnp.exp(score2 - jnp.max(score2, keepdims=True))
    num2 = jnp.dot(bselT_img_ref[...], e2 * imgproj[:, hid:2 * hid],
                   preferred_element_type=f32)               # [B, H] = sum_r e_r * (img_r @ Wf_i)
    den2 = jnp.dot(bselT_img_ref[...], jnp.broadcast_to(e2, (nr, hid)),
                   preferred_element_type=f32)
    fi = num2 * (1.0 / den2)                                 # img_final @ Wf_i

    # ---- fusion: tanh(Linear(cat(qf, att_his, img_final))) ----
    # TODO(synk): dropout layers are identity (eval mode); no stochastic path.
    out_ref[...] = jnp.tanh(fq + fh + fi + bfus_ref[...])


# ----------------------------------------------------------------------------
# Wrapper: embedding glue + weight packing + single pallas_call
# ----------------------------------------------------------------------------
@jax.jit
def hciae_forward(params, img_feat, ques, ques_len, hist, hist_len):
    f32 = jnp.float32
    bsz, rnd, t_h = hist.shape
    t_q = ques.shape[1]
    r = img_feat.shape[1]
    d = img_feat.shape[2]
    hid = params["bfus"].shape[1]
    t_max = max(t_q, t_h)
    nq = bsz
    nh = bsz * rnd
    n = nq + nh
    n_pad = ((n + 7) // 8) * 8          # round rows up to a sublane multiple

    # ---- embeddings: time-major, block-diagonal feature packing ----
    q_emb = jnp.take(params["embed"], ques, axis=0)                        # [B, Tq, E]
    h_emb = jnp.take(params["embed"], hist.reshape(nh, t_h), axis=0)       # [B*RND, Th, E]
    q_emb = jnp.pad(q_emb, ((0, 0), (0, t_max - t_q), (0, 0)))
    h_emb = jnp.pad(h_emb, ((0, 0), (0, t_max - t_h), (0, 0)))
    # question rows use feature cols [0, E), history rows use [E, 2E)
    q_blk = jnp.concatenate([q_emb, jnp.zeros_like(q_emb)], axis=-1)       # [B, T, 2E]
    h_blk = jnp.concatenate([jnp.zeros_like(h_emb), h_emb], axis=-1)       # [B*RND, T, 2E]
    emb = jnp.concatenate([q_blk, h_blk], axis=0)                          # [N, T, 2E]
    emb = jnp.pad(emb, ((0, n_pad - n), (0, 0), (0, 0)))
    emb_t = jnp.transpose(emb, (1, 0, 2))                                  # [T, N_pad, 2E]

    # sequence lengths: clamp to [1, T] (pack_padded semantics need len >= 1);
    # padding rows get length 0 so they never latch.
    lens = jnp.concatenate([ques_len.reshape(-1), hist_len.reshape(-1)]).astype(jnp.int32)
    lens = jnp.clip(lens, 1, t_max)
    lens = jnp.pad(lens, (0, n_pad - n)).reshape(n_pad, 1)

    # ---- LSTM weight packing with the sigmoid-as-tanh pre-scale ----
    # sigmoid(x) = 0.5*tanh(x/2)+0.5  ->  scale i/f/o gate columns by 0.5.
    ifo_scale = jnp.concatenate([jnp.full((2 * hid,), 0.5, f32),
                                 jnp.ones((hid,), f32),
                                 jnp.full((hid,), 0.5, f32)])
    wih_stack = jnp.concatenate([params["q_wih"], params["h_wih"]], axis=0) * ifo_scale   # [2E, 4H]
    whh_wide = jnp.concatenate([params["q_whh"] * ifo_scale,
                                params["h_whh"] * ifo_scale], axis=1)                     # [H, 8H]
    bias_rows = jnp.concatenate(
        [jnp.tile(params["q_b"] * ifo_scale, (nq, 1)),
         jnp.tile(params["h_b"] * ifo_scale, (nh, 1)),
         jnp.zeros((n_pad - n, 4 * hid), f32)], axis=0)                                   # [N_pad, 4H]

    # ---- attention / fusion weight lane-packing + block stacking ----
    wq_pack = jnp.concatenate([params["Wq1"], params["Wq2"], params["Wf_q"]], axis=1)     # [H, 3H]
    wh_pack = jnp.concatenate([params["Wh1"], params["Wh2"], params["Wf_h"]], axis=1)     # [H, 3H]
    w_qh_stack = jnp.concatenate([wq_pack, wh_pack], axis=0)                              # [2H, 3H]
    bq_pack = jnp.concatenate([params["bq1"], params["bq2"],
                               jnp.zeros_like(params["bq1"])], axis=1)                    # [1, 3H]
    wimg_pack = jnp.concatenate([params["Wi2"], params["Wf_i"]], axis=1)                  # [D, 2H]

    # ---- group-selector matrices (replace sub-tile 3-D reshapes in the epilogue) ----
    bsel_his = jnp.repeat(jnp.eye(bsz, dtype=f32), rnd, axis=0)     # [B*RND, B]
    bsel_img = jnp.repeat(jnp.eye(bsz, dtype=f32), r, axis=0)       # [B*R,  B]

    img_flat = img_feat.reshape(bsz * r, d)

    args = (
        emb_t, lens, img_flat,
        wih_stack, bias_rows, whh_wide,
        w_qh_stack, bq_pack, params["bh1"], params["bh2"], params["Wqh1"],
        wimg_pack, params["bi2"], params["Wall2"], params["bfus"],
        bsel_his, bsel_his.T, bsel_img, bsel_img.T,
        params["bqh1"], params["ball2"],
    )
    in_specs = [_VMEM] * (len(args) - 2) + [_SMEM, _SMEM]

    # Gridless single launch: total footprint << 1 MiB, latency-bound on the
    # serial recurrence.  (A "parallel" batch grid only pays off on v7x once
    # B/RND grow well beyond toy sizes.)
    return pl.pallas_call(
        hciae_fused_kernel,
        out_shape=jax.ShapeDtypeStruct((bsz, hid), jnp.float32),
        in_specs=in_specs,
        out_specs=_VMEM,
    )(*args)


# ----------------------------------------------------------------------------
# Parameter init (deterministic, synthetic)
# ----------------------------------------------------------------------------
def init_params(key):
    ks = iter(jax.random.split(key, 40))

    def lin(fan_in, fan_out):
        # kaiming-uniform-ish, stored transposed as [in, out] for x @ W; bias = 0
        bound = (6.0 / fan_in) ** 0.5
        w = jax.random.uniform(next(ks), (fan_in, fan_out), jnp.float32, -bound, bound)
        b = jnp.zeros((1, fan_out), jnp.float32)
        return w, b

    def lstm(e, h):
        bound = (1.0 / h) ** 0.5
        wih = jax.random.uniform(next(ks), (e, 4 * h), jnp.float32, -bound, bound)
        whh = jax.random.uniform(next(ks), (h, 4 * h), jnp.float32, -bound, bound)
        b = jax.random.uniform(next(ks), (1, 4 * h), jnp.float32, -bound, bound)
        return wih, whh, b   # b plays the role of PyTorch's b_ih + b_hh

    p = {}
    emb = jax.random.normal(next(ks), (VOCAB, E), jnp.float32) * 0.1
    p["embed"] = emb.at[PAD_INDEX].set(0.0)

    p["q_wih"], p["q_whh"], p["q_b"] = lstm(E, H)
    p["h_wih"], p["h_whh"], p["h_b"] = lstm(E, H)

    p["Wq1"], p["bq1"] = lin(H, H)
    p["Wh1"], p["bh1"] = lin(H, H)
    wqh1, bqh1 = lin(H, 1)
    p["Wqh1"], p["bqh1"] = wqh1.T, bqh1.reshape(1, 1)     # [1, H], [1, 1]

    p["Wq2"], p["bq2"] = lin(H, H)
    p["Wh2"], p["bh2"] = lin(H, H)
    p["Wi2"], p["bi2"] = lin(D_IMG, H)
    wall2, ball2 = lin(H, 1)
    p["Wall2"], p["ball2"] = wall2.T, ball2.reshape(1, 1)

    wfus, bfus = lin(2 * H + D_IMG, H)   # fusion over cat(ques, his, img)
    p["Wf_q"] = wfus[0:H, :]
    p["Wf_h"] = wfus[H:2 * H, :]
    p["Wf_i"] = wfus[2 * H:, :]
    p["bfus"] = bfus
    return p


# ----------------------------------------------------------------------------
# Pure-JAX reference (mirrors the PyTorch module, eval mode)
# ----------------------------------------------------------------------------
def reference_forward(params, img_feat, ques, ques_len, hist, hist_len):
    bsz, rnd, t_h = hist.shape
    hid = params["q_whh"].shape[0]

    def lstm_last(x, lens, wih, whh, bias):   # x: [N, T, E]; returns h at t = len-1
        n_, t_, _ = x.shape
        h = jnp.zeros((n_, hid), jnp.float32)
        c = jnp.zeros((n_, hid), jnp.float32)
        h_out = jnp.zeros((n_, hid), jnp.float32)
        for t in range(t_):
            g = x[:, t, :] @ wih + h @ whh + bias
            i = jax.nn.sigmoid(g[:, 0:hid])
            f = jax.nn.sigmoid(g[:, hid:2 * hid])
            gg = jnp.tanh(g[:, 2 * hid:3 * hid])
            o = jax.nn.sigmoid(g[:, 3 * hid:4 * hid])
            c = f * c + i * gg
            h = o * jnp.tanh(c)
            h_out = jnp.where((lens == t + 1)[:, None], h, h_out)
        return h_out

    q_emb = jnp.take(params["embed"], ques, axis=0)
    h_emb = jnp.take(params["embed"], hist.reshape(bsz * rnd, t_h), axis=0)
    qf = lstm_last(q_emb, ques_len.astype(jnp.int32),
                   params["q_wih"], params["q_whh"], params["q_b"])
    hf = lstm_last(h_emb, hist_len.reshape(-1).astype(jnp.int32),
                   params["h_wih"], params["h_whh"], params["h_b"]).reshape(bsz, rnd, hid)

    # ques_att_on_his
    q1 = qf @ params["Wq1"] + params["bq1"]
    h1 = hf @ params["Wh1"] + params["bh1"]
    s1 = jnp.tanh(h1 + q1[:, None, :])
    score1 = jnp.einsum("brh,h->br", s1, params["Wqh1"][0]) + params["bqh1"][0, 0]
    w1 = jax.nn.softmax(score1, axis=-1)
    att_his = jnp.einsum("br,brh->bh", w1, hf)

    # qh_att_on_img
    q2 = qf @ params["Wq2"] + params["bq2"]
    h2 = att_his @ params["Wh2"] + params["bh2"]
    i2 = img_feat @ params["Wi2"] + params["bi2"]
    s2 = jnp.tanh(i2 + q2[:, None, :] + h2[:, None, :])
    score2 = jnp.einsum("brh,h->br", s2, params["Wall2"][0]) + params["ball2"][0, 0]
    w2 = jax.nn.softmax(score2, axis=-1)
    img_final = jnp.einsum("br,brd->bd", w2, img_feat)

    fused = (qf @ params["Wf_q"] + att_his @ params["Wf_h"]
             + img_final @ params["Wf_i"] + params["bfus"])
    return jnp.tanh(fused)


# ----------------------------------------------------------------------------
if __name__ == "__main__":
    key = jax.random.PRNGKey(0)
    k_p, k_img, k_q, k_h, k_ql, k_hl = jax.random.split(key, 6)

    params = init_params(k_p)

    img_feat = jax.random.normal(k_img, (B, R, D_IMG), jnp.float32)
    ques = jax.random.randint(k_q, (B, T_Q), 1, VOCAB, dtype=jnp.int32)
    hist = jax.random.randint(k_h, (B, RND, T_H), 1, VOCAB, dtype=jnp.int32)
    ques_len = jax.random.randint(k_ql, (B,), 2, T_Q + 1, dtype=jnp.int32)
    hist_len = jax.random.randint(k_hl, (B, RND), 2, T_H + 1, dtype=jnp.int32)

    # pack_padded_sequence semantics require every sequence length >= 1
    assert int(jnp.min(ques_len)) >= 1 and int(jnp.min(hist_len)) >= 1

    out = hciae_forward(params, img_feat, ques, ques_len, hist, hist_len)
    out = jax.block_until_ready(out)
    assert out.shape == (B, H) and out.dtype == jnp.float32

    ref = reference_forward(params, img_feat, ques, ques_len, hist, hist_len)
    err = float(jnp.max(jnp.abs(out - ref)))
    assert err < 1e-3, f"Pallas kernel mismatch vs pure-JAX reference (max |diff| = {err})"

    print("KERNEL_OK")
</pallas_src>

<mosaic_0001>
module attributes {stable_mosaic.version = 11 : i64} {
  func.func @hciae_fused_kernel(%arg0: memref<8x16x64xf32, #tpu.memory_space<vmem>>, %arg1: memref<16x1xi32, #tpu.memory_space<vmem>>, %arg2: memref<16x64xf32, #tpu.memory_space<vmem>>, %arg3: memref<64x128xf32, #tpu.memory_space<vmem>>, %arg4: memref<16x128xf32, #tpu.memory_space<vmem>>, %arg5: memref<32x256xf32, #tpu.memory_space<vmem>>, %arg6: memref<64x96xf32, #tpu.memory_space<vmem>>, %arg7: memref<1x96xf32, #tpu.memory_space<vmem>>, %arg8: memref<1x32xf32, #tpu.memory_space<vmem>>, %arg9: memref<1x32xf32, #tpu.memory_space<vmem>>, %arg10: memref<1x32xf32, #tpu.memory_space<vmem>>, %arg11: memref<64x64xf32, #tpu.memory_space<vmem>>, %arg12: memref<1x32xf32, #tpu.memory_space<vmem>>, %arg13: memref<1x32xf32, #tpu.memory_space<vmem>>, %arg14: memref<1x32xf32, #tpu.memory_space<vmem>>, %arg15: memref<8x2xf32, #tpu.memory_space<vmem>>, %arg16: memref<2x8xf32, #tpu.memory_space<vmem>>, %arg17: memref<16x2xf32, #tpu.memory_space<vmem>>, %arg18: memref<2x16xf32, #tpu.memory_space<vmem>>, %arg19: memref<1x1xf32, #tpu.memory_space<smem>>, %arg20: memref<1x1xf32, #tpu.memory_space<smem>>, %arg21: memref<2x32xf32, #tpu.memory_space<vmem>>) attributes {dimension_semantics = [], scalar_prefetch = 0 : i64, scratch_operands = 0 : i64, tpu.core_type = #tpu.core_type<tc>} {
    %c0 = arith.constant 0 : index
    %c0_0 = arith.constant 0 : index
    %c0_1 = arith.constant 0 : index
    %0 = vector.load %arg0[%c0, %c0_0, %c0_1] : memref<8x16x64xf32, #tpu.memory_space<vmem>>, vector<8x16x64xf32>
    %1 = vector.shape_cast %0 : vector<8x16x64xf32> to vector<128x64xf32>
    %c0_2 = arith.constant 0 : index
    %c0_3 = arith.constant 0 : index
    %2 = vector.load %arg3[%c0_2, %c0_3] : memref<64x128xf32, #tpu.memory_space<vmem>>, vector<64x128xf32>
    %cst = arith.constant dense<0.000000e+00> : vector<128x128xf32>
    %3 = tpu.matmul %1, %2, %cst {dimension_numbers = #tpu.dot_dimension_numbers<[1], [0], [0], [1], [0, 0, 1, 1], [], []>} : vector<128x64xf32>, vector<64x128xf32>, vector<128x128xf32> -> vector<128x128xf32>
    %4 = vector.shape_cast %3 : vector<128x128xf32> to vector<8x16x128xf32>
    %c0_4 = arith.constant 0 : index
    %c0_5 = arith.constant 0 : index
    %5 = vector.load %arg4[%c0_4, %c0_5] : memref<16x128xf32, #tpu.memory_space<vmem>>, vector<16x128xf32>
    %6 = vector.shape_cast %5 : vector<16x128xf32> to vector<1x16x128xf32>
    %7 = vector.broadcast %6 : vector<1x16x128xf32> to vector<8x16x128xf32>
    %8 = arith.addf %4, %7 : vector<8x16x128xf32>
    %c0_6 = arith.constant 0 : index
    %c0_7 = arith.constant 0 : index
    %9 = vector.load %arg1[%c0_6, %c0_7] : memref<16x1xi32, #tpu.memory_space<vmem>>, vector<16x1xi32>
    %c0_8 = arith.constant 0 : index
    %c0_9 = arith.constant 0 : index
    %10 = vector.load %arg5[%c0_8, %c0_9] : memref<32x256xf32, #tpu.memory_space<vmem>>, vector<32x256xf32>
    %11 = tpu.iota {dimensions = array<i32: 1>} : vector<16x128xi32>
    %c64_i32 = arith.constant 64 : i32
    %12 = vector.broadcast %c64_i32 : i32 to vector<16x128xi32>
    %13 = arith.cmpi sge, %11, %12 : vector<16x128xi32>
    %c96_i32 = arith.constant 96 : i32
    %14 = vector.broadcast %c96_i32 : i32 to vector<16x128xi32>
    %15 = arith.cmpi slt, %11, %14 : vector<16x128xi32>
    %16 = arith.andi %13, %15 : vector<16x128xi1>
    %17 = tpu.iota {dimensions = array<i32: 0>} : vector<16x128xi32>
    %c2_i32 = arith.constant 2 : i32
    %18 = vector.broadcast %c2_i32 : i32 to vector<16x128xi32>
    %19 = arith.cmpi slt, %17, %18 : vector<16x128xi32>
    %20 = tpu.iota {dimensions = array<i32: 0>} : vector<16x32xi32>
    %c2_i32_10 = arith.constant 2 : i32
    %21 = vector.broadcast %c2_i32_10 : i32 to vector<16x32xi32>
    %22 = arith.cmpi slt, %20, %21 : vector<16x32xi32>
    %cst_11 = arith.constant 0.000000e+00 : f32
    %23 = vector.broadcast %cst_11 : f32 to vector<16x32xf32>
    %cst_12 = arith.constant 0.000000e+00 : f32
    %24 = vector.broadcast %cst_12 : f32 to vector<16x32xf32>
    %cst_13 = arith.constant 0.000000e+00 : f32
    %25 = vector.broadcast %cst_13 : f32 to vector<16x32xf32>
    %cst_14 = arith.constant dense<0.000000e+00> : vector<16x256xf32>
    %26 = tpu.matmul %23, %10, %cst_14 {dimension_numbers = #tpu.dot_dimension_numbers<[1], [0], [0], [1], [0, 0, 1, 1], [], []>} : vector<16x32xf32>, vector<32x256xf32>, vector<16x256xf32> -> vector<16x256xf32>
    %27 = vector.extract_strided_slice %8 {offsets = [0, 0, 0], sizes = [1, 16, 128], strides = [1, 1, 1]} : vector<8x16x128xf32> to vector<1x16x128xf32>
    %28 = vector.shape_cast %27 : vector<1x16x128xf32> to vector<16x128xf32>
    %29 = vector.extract_strided_slice %26 {offsets = [0, 0], sizes = [16, 128], strides = [1, 1]} : vector<16x256xf32> to vector<16x128xf32>
    %30 = vector.extract_strided_slice %26 {offsets = [0, 128], sizes = [16, 128], strides = [1, 1]} : vector<16x256xf32> to vector<16x128xf32>
    %31 = arith.select %19, %29, %30 : vector<16x128xi1>, vector<16x128xf32>
    %32 = arith.addf %28, %31 : vector<16x128xf32>
    %33 = math.tanh %32 : vector<16x128xf32>
    %cst_15 = arith.constant 5.000000e-01 : f32
    %34 = vector.broadcast %cst_15 : f32 to vector<16x128xf32>
    %35 = arith.mulf %34, %33 : vector<16x128xf32>
    %cst_16 = arith.constant 5.000000e-01 : f32
    %36 = vector.broadcast %cst_16 : f32 to vector<16x128xf32>
    %37 = arith.addf %35, %36 : vector<16x128xf32>
    %38 = arith.select %16, %33, %37 : vector<16x128xi1>, vector<16x128xf32>
    %39 = vector.extract_strided_slice %38 {offsets = [0, 0], sizes = [16, 32], strides = [1, 1]} : vector<16x128xf32> to vector<16x32xf32>
    %40 = vector.extract_strided_slice %38 {offsets = [0, 32], sizes = [16, 32], strides = [1, 1]} : vector<16x128xf32> to vector<16x32xf32>
    %41 = vector.extract_strided_slice %38 {offsets = [0, 64], sizes = [16, 32], strides = [1, 1]} : vector<16x128xf32> to vector<16x32xf32>
    %42 = vector.extract_strided_slice %38 {offsets = [0, 96], sizes = [16, 32], strides = [1, 1]} : vector<16x128xf32> to vector<16x32xf32>
    %43 = arith.mulf %40, %24 : vector<16x32xf32>
    %44 = arith.mulf %39, %41 : vector<16x32xf32>
    %45 = arith.addf %43, %44 : vector<16x32xf32>
    %46 = math.tanh %45 : vector<16x32xf32>
    %47 = arith.mulf %42, %46 : vector<16x32xf32>
    %c1_i32 = arith.constant 1 : i32
    %48 = vector.broadcast %c1_i32 : i32 to vector<16x1xi32>
    %49 = arith.cmpi eq, %9, %48 : vector<16x1xi32>
    %50 = vector.shape_cast %49 : vector<16x1xi1> to vector<16x1xi1>
    %51 = vector.broadcast %50 : vector<16x1xi1> to vector<16x32xi1>
    %52 = arith.select %51, %47, %25 : vector<16x32xi1>, vector<16x32xf32>
    %cst_17 = arith.constant dense<0.000000e+00> : vector<16x256xf32>
    %53 = tpu.matmul %47, %10, %cst_17 {dimension_numbers = #tpu.dot_dimension_numbers<[1], [0], [0], [1], [0, 0, 1, 1], [], []>} : vector<16x32xf32>, vector<32x256xf32>, vector<16x256xf32> -> vector<16x256xf32>
    %54 = vector.extract_strided_slice %8 {offsets = [1, 0, 0], sizes = [1, 16, 128], strides = [1, 1, 1]} : vector<8x16x128xf32> to vector<1x16x128xf32>
    %55 = vector.shape_cast %54 : vector<1x16x128xf32> to vector<16x128xf32>
    %56 = vector.extract_strided_slice %53 {offsets = [0, 0], sizes = [16, 128], strides = [1, 1]} : vector<16x256xf32> to vector<16x128xf32>
    %57 = vector.extract_strided_slice %53 {offsets = [0, 128], sizes = [16, 128], strides = [1, 1]} : vector<16x256xf32> to vector<16x128xf32>
    %58 = arith.select %19, %56, %57 : vector<16x128xi1>, vector<16x128xf32>
    %59 = arith.addf %55, %58 : vector<16x128xf32>
    %60 = math.tanh %59 : vector<16x128xf32>
    %cst_18 = arith.constant 5.000000e-01 : f32
    %61 = vector.broadcast %cst_18 : f32 to vector<16x128xf32>
    %62 = arith.mulf %61, %60 : vector<16x128xf32>
    %cst_19 = arith.constant 5.000000e-01 : f32
    %63 = vector.broadcast %cst_19 : f32 to vector<16x128xf32>
    %64 = arith.addf %62, %63 : vector<16x128xf32>
    %65 = arith.select %16, %60, %64 : vector<16x128xi1>, vector<16x128xf32>
    %66 = vector.extract_strided_slice %65 {offsets = [0, 0], sizes = [16, 32], strides = [1, 1]} : vector<16x128xf32> to vector<16x32xf32>
    %67 = vector.extract_strided_slice %65 {offsets = [0, 32], sizes = [16, 32], strides = [1, 1]} : vector<16x128xf32> to vector<16x32xf32>
    %68 = vector.extract_strided_slice %65 {offsets = [0, 64], sizes = [16, 32], strides = [1, 1]} : vector<16x128xf32> to vector<16x32xf32>
    %69 = vector.extract_strided_slice %65 {offsets = [0, 96], sizes = [16, 32], strides = [1, 1]} : vector<16x128xf32> to vector<16x32xf32>
    %70 = arith.mulf %67, %45 : vector<16x32xf32>
    %71 = arith.mulf %66, %68 : vector<16x32xf32>
    %72 = arith.addf %70, %71 : vector<16x32xf32>
    %73 = math.tanh %72 : vector<16x32xf32>
    %74 = arith.mulf %69, %73 : vector<16x32xf32>
    %c2_i32_20 = arith.constant 2 : i32
    %75 = vector.broadcast %c2_i32_20 : i32 to vector<16x1xi32>
    %76 = arith.cmpi eq, %9, %75 : vector<16x1xi32>
    %77 = vector.shape_cast %76 : vector<16x1xi1> to vector<16x1xi1>
    %78 = vector.broadcast %77 : vector<16x1xi1> to vector<16x32xi1>
    %79 = arith.select %78, %74, %52 : vector<16x32xi1>, vector<16x32xf32>
    %cst_21 = arith.constant dense<0.000000e+00> : vector<16x256xf32>
    %80 = tpu.matmul %74, %10, %cst_21 {dimension_numbers = #tpu.dot_dimension_numbers<[1], [0], [0], [1], [0, 0, 1, 1], [], []>} : vector<16x32xf32>, vector<32x256xf32>, vector<16x256xf32> -> vector<16x256xf32>
    %81 = vector.extract_strided_slice %8 {offsets = [2, 0, 0], sizes = [1, 16, 128], strides = [1, 1, 1]} : vector<8x16x128xf32> to vector<1x16x128xf32>
    %82 = vector.shape_cast %81 : vector<1x16x128xf32> to vector<16x128xf32>
    %83 = vector.extract_strided_slice %80 {offsets = [0, 0], sizes = [16, 128], strides = [1, 1]} : vector<16x256xf32> to vector<16x128xf32>
    %84 = vector.extract_strided_slice %80 {offsets = [0, 128], sizes = [16, 128], strides = [1, 1]} : vector<16x256xf32> to vector<16x128xf32>
    %85 = arith.select %19, %83, %84 : vector<16x128xi1>, vector<16x128xf32>
    %86 = arith.addf %82, %85 : vector<16x128xf32>
    %87 = math.tanh %86 : vector<16x128xf32>
    %cst_22 = arith.constant 5.000000e-01 : f32
    %88 = vector.broadcast %cst_22 : f32 to vector<16x128xf32>
    %89 = arith.mulf %88, %87 : vector<16x128xf32>
    %cst_23 = arith.constant 5.000000e-01 : f32
    %90 = vector.broadcast %cst_23 : f32 to vector<16x128xf32>
    %91 = arith.addf %89, %90 : vector<16x128xf32>
    %92 = arith.select %16, %87, %91 : vector<16x128xi1>, vector<16x128xf32>
    %93 = vector.extract_strided_slice %92 {offsets = [0, 0], sizes = [16, 32], strides = [1, 1]} : vector<16x128xf32> to vector<16x32xf32>
    %94 = vector.extract_strided_slice %92 {offsets = [0, 32], sizes = [16, 32], strides = [1, 1]} : vector<16x128xf32> to vector<16x32xf32>
    %95 = vector.extract_strided_slice %92 {offsets = [0, 64], sizes = [16, 32], strides = [1, 1]} : vector<16x128xf32> to vector<16x32xf32>
    %96 = vector.extract_strided_slice %92 {offsets = [0, 96], sizes = [16, 32], strides = [1, 1]} : vector<16x128xf32> to vector<16x32xf32>
    %97 = arith.mulf %94, %72 : vector<16x32xf32>
    %98 = arith.mulf %93, %95 : vector<16x32xf32>
    %99 = arith.addf %97, %98 : vector<16x32xf32>
    %100 = math.tanh %99 : vector<16x32xf32>
    %101 = arith.mulf %96, %100 : vector<16x32xf32>
    %c3_i32 = arith.constant 3 : i32
    %102 = vector.broadcast %c3_i32 : i32 to vector<16x1xi32>
    %103 = arith.cmpi eq, %9, %102 : vector<16x1xi32>
    %104 = vector.shape_cast %103 : vector<16x1xi1> to vector<16x1xi1>
    %105 = vector.broadcast %104 : vector<16x1xi1> to vector<16x32xi1>
    %106 = arith.select %105, %101, %79 : vector<16x32xi1>, vector<16x32xf32>
    %cst_24 = arith.constant dense<0.000000e+00> : vector<16x256xf32>
    %107 = tpu.matmul %101, %10, %cst_24 {dimension_numbers = #tpu.dot_dimension_numbers<[1], [0], [0], [1], [0, 0, 1, 1], [], []>} : vector<16x32xf32>, vector<32x256xf32>, vector<16x256xf32> -> vector<16x256xf32>
    %108 = vector.extract_strided_slice %8 {offsets = [3, 0, 0], sizes = [1, 16, 128], strides = [1, 1, 1]} : vector<8x16x128xf32> to vector<1x16x128xf32>
    %109 = vector.shape_cast %108 : vector<1x16x128xf32> to vector<16x128xf32>
    %110 = vector.extract_strided_slice %107 {offsets = [0, 0], sizes = [16, 128], strides = [1, 1]} : vector<16x256xf32> to vector<16x128xf32>
    %111 = vector.extract_strided_slice %107 {offsets = [0, 128], sizes = [16, 128], strides = [1, 1]} : vector<16x256xf32> to vector<16x128xf32>
    %112 = arith.select %19, %110, %111 : vector<16x128xi1>, vector<16x128xf32>
    %113 = arith.addf %109, %112 : vector<16x128xf32>
    %114 = math.tanh %113 : vector<16x128xf32>
    %cst_25 = arith.constant 5.000000e-01 : f32
    %115 = vector.broadcast %cst_25 : f32 to vector<16x128xf32>
    %116 = arith.mulf %115, %114 : vector<16x128xf32>
    %cst_26 = arith.constant 5.000000e-01 : f32
    %117 = vector.broadcast %cst_26 : f32 to vector<16x128xf32>
    %118 = arith.addf %116, %117 : vector<16x128xf32>
    %119 = arith.select %16, %114, %118 : vector<16x128xi1>, vector<16x128xf32>
    %120 = vector.extract_strided_slice %119 {offsets = [0, 0], sizes = [16, 32], strides = [1, 1]} : vector<16x128xf32> to vector<16x32xf32>
    %121 = vector.extract_strided_slice %119 {offsets = [0, 32], sizes = [16, 32], strides = [1, 1]} : vector<16x128xf32> to vector<16x32xf32>
    %122 = vector.extract_strided_slice %119 {offsets = [0, 64], sizes = [16, 32], strides = [1, 1]} : vector<16x128xf32> to vector<16x32xf32>
    %123 = vector.extract_strided_slice %119 {offsets = [0, 96], sizes = [16, 32], strides = [1, 1]} : vector<16x128xf32> to vector<16x32xf32>
    %124 = arith.mulf %121, %99 : vector<16x32xf32>
    %125 = arith.mulf %120, %122 : vector<16x32xf32>
    %126 = arith.addf %124, %125 : vector<16x32xf32>
    %127 = math.tanh %126 : vector<16x32xf32>
    %128 = arith.mulf %123, %127 : vector<16x32xf32>
    %c4_i32 = arith.constant 4 : i32
    %129 = vector.broadcast %c4_i32 : i32 to vector<16x1xi32>
    %130 = arith.cmpi eq, %9, %129 : vector<16x1xi32>
    %131 = vector.shape_cast %130 : vector<16x1xi1> to vector<16x1xi1>
    %132 = vector.broadcast %131 : vector<16x1xi1> to vector<16x32xi1>
    %133 = arith.select %132, %128, %106 : vector<16x32xi1>, vector<16x32xf32>
    %cst_27 = arith.constant dense<0.000000e+00> : vector<16x256xf32>
    %134 = tpu.matmul %128, %10, %cst_27 {dimension_numbers = #tpu.dot_dimension_numbers<[1], [0], [0], [1], [0, 0, 1, 1], [], []>} : vector<16x32xf32>, vector<32x256xf32>, vector<16x256xf32> -> vector<16x256xf32>
    %135 = vector.extract_strided_slice %8 {offsets = [4, 0, 0], sizes = [1, 16, 128], strides = [1, 1, 1]} : vector<8x16x128xf32> to vector<1x16x128xf32>
    %136 = vector.shape_cast %135 : vector<1x16x128xf32> to vector<16x128xf32>
    %137 = vector.extract_strided_slice %134 {offsets = [0, 0], sizes = [16, 128], strides = [1, 1]} : vector<16x256xf32> to vector<16x128xf32>
    %138 = vector.extract_strided_slice %134 {offsets = [0, 128], sizes = [16, 128], strides = [1, 1]} : vector<16x256xf32> to vector<16x128xf32>
    %139 = arith.select %19, %137, %138 : vector<16x128xi1>, vector<16x128xf32>
    %140 = arith.addf %136, %139 : vector<16x128xf32>
    %141 = math.tanh %140 : vector<16x128xf32>
    %cst_28 = arith.constant 5.000000e-01 : f32
    %142 = vector.broadcast %cst_28 : f32 to vector<16x128xf32>
    %143 = arith.mulf %142, %141 : vector<16x128xf32>
    %cst_29 = arith.constant 5.000000e-01 : f32
    %144 = vector.broadcast %cst_29 : f32 to vector<16x128xf32>
    %145 = arith.addf %143, %144 : vector<16x128xf32>
    %146 = arith.select %16, %141, %145 : vector<16x128xi1>, vector<16x128xf32>
    %147 = vector.extract_strided_slice %146 {offsets = [0, 0], sizes = [16, 32], strides = [1, 1]} : vector<16x128xf32> to vector<16x32xf32>
    %148 = vector.extract_strided_slice %146 {offsets = [0, 32], sizes = [16, 32], strides = [1, 1]} : vector<16x128xf32> to vector<16x32xf32>
    %149 = vector.extract_strided_slice %146 {offsets = [0, 64], sizes = [16, 32], strides = [1, 1]} : vector<16x128xf32> to vector<16x32xf32>
    %150 = vector.extract_strided_slice %146 {offsets = [0, 96], sizes = [16, 32], strides = [1, 1]} : vector<16x128xf32> to vector<16x32xf32>
    %151 = arith.mulf %148, %126 : vector<16x32xf32>
    %152 = arith.mulf %147, %149 : vector<16x32xf32>
    %153 = arith.addf %151, %152 : vector<16x32xf32>
    %154 = math.tanh %153 : vector<16x32xf32>
    %155 = arith.mulf %150, %154 : vector<16x32xf32>
    %c5_i32 = arith.constant 5 : i32
    %156 = vector.broadcast %c5_i32 : i32 to vector<16x1xi32>
    %157 = arith.cmpi eq, %9, %156 : vector<16x1xi32>
    %158 = vector.shape_cast %157 : vector<16x1xi1> to vector<16x1xi1>
    %159 = vector.broadcast %158 : vector<16x1xi1> to vector<16x32xi1>
    %160 = arith.select %159, %155, %133 : vector<16x32xi1>, vector<16x32xf32>
    %cst_30 = arith.constant dense<0.000000e+00> : vector<16x256xf32>
    %161 = tpu.matmul %155, %10, %cst_30 {dimension_numbers = #tpu.dot_dimension_numbers<[1], [0], [0], [1], [0, 0, 1, 1], [], []>} : vector<16x32xf32>, vector<32x256xf32>, vector<16x256xf32> -> vector<16x256xf32>
    %162 = vector.extract_strided_slice %8 {offsets = [5, 0, 0], sizes = [1, 16, 128], strides = [1, 1, 1]} : vector<8x16x128xf32> to vector<1x16x128xf32>
    %163 = vector.shape_cast %162 : vector<1x16x128xf32> to vector<16x128xf32>
    %164 = vector.extract_strided_slice %161 {offsets = [0, 0], sizes = [16, 128], strides = [1, 1]} : vector<16x256xf32> to vector<16x128xf32>
    %165 = vector.extract_strided_slice %161 {offsets = [0, 128], sizes = [16, 128], strides = [1, 1]} : vector<16x256xf32> to vector<16x128xf32>
    %166 = arith.select %19, %164, %165 : vector<16x128xi1>, vector<16x128xf32>
    %167 = arith.addf %163, %166 : vector<16x128xf32>
    %168 = math.tanh %167 : vector<16x128xf32>
    %cst_31 = arith.constant 5.000000e-01 : f32
    %169 = vector.broadcast %cst_31 : f32 to vector<16x128xf32>
    %170 = arith.mulf %169, %168 : vector<16x128xf32>
    %cst_32 = arith.constant 5.000000e-01 : f32
    %171 = vector.broadcast %cst_32 : f32 to vector<16x128xf32>
    %172 = arith.addf %170, %171 : vector<16x128xf32>
    %173 = arith.select %16, %168, %172 : vector<16x128xi1>, vector<16x128xf32>
    %174 = vector.extract_strided_slice %173 {offsets = [0, 0], sizes = [16, 32], strides = [1, 1]} : vector<16x128xf32> to vector<16x32xf32>
    %175 = vector.extract_strided_slice %173 {offsets = [0, 32], sizes = [16, 32], strides = [1, 1]} : vector<16x128xf32> to vector<16x32xf32>
    %176 = vector.extract_strided_slice %173 {offsets = [0, 64], sizes = [16, 32], strides = [1, 1]} : vector<16x128xf32> to vector<16x32xf32>
    %177 = vector.extract_strided_slice %173 {offsets = [0, 96], sizes = [16, 32], strides = [1, 1]} : vector<16x128xf32> to vector<16x32xf32>
    %178 = arith.mulf %175, %153 : vector<16x32xf32>
    %179 = arith.mulf %174, %176 : vector<16x32xf32>
    %180 = arith.addf %178, %179 : vector<16x32xf32>
    %181 = math.tanh %180 : vector<16x32xf32>
    %182 = arith.mulf %177, %181 : vector<16x32xf32>
    %c6_i32 = arith.constant 6 : i32
    %183 = vector.broadcast %c6_i32 : i32 to vector<16x1xi32>
    %184 = arith.cmpi eq, %9, %183 : vector<16x1xi32>
    %185 = vector.shape_cast %184 : vector<16x1xi1> to vector<16x1xi1>
    %186 = vector.broadcast %185 : vector<16x1xi1> to vector<16x32xi1>
    %187 = arith.select %186, %182, %160 : vector<16x32xi1>, vector<16x32xf32>
    %cst_33 = arith.constant dense<0.000000e+00> : vector<16x256xf32>
    %188 = tpu.matmul %182, %10, %cst_33 {dimension_numbers = #tpu.dot_dimension_numbers<[1], [0], [0], [1], [0, 0, 1, 1], [], []>} : vector<16x32xf32>, vector<32x256xf32>, vector<16x256xf32> -> vector<16x256xf32>
    %189 = vector.extract_strided_slice %8 {offsets = [6, 0, 0], sizes = [1, 16, 128], strides = [1, 1, 1]} : vector<8x16x128xf32> to vector<1x16x128xf32>
    %190 = vector.shape_cast %189 : vector<1x16x128xf32> to vector<16x128xf32>
    %191 = vector.extract_strided_slice %188 {offsets = [0, 0], sizes = [16, 128], strides = [1, 1]} : vector<16x256xf32> to vector<16x128xf32>
    %192 = vector.extract_strided_slice %188 {offsets = [0, 128], sizes = [16, 128], strides = [1, 1]} : vector<16x256xf32> to vector<16x128xf32>
    %193 = arith.select %19, %191, %192 : vector<16x128xi1>, vector<16x128xf32>
    %194 = arith.addf %190, %193 : vector<16x128xf32>
    %195 = math.tanh %194 : vector<16x128xf32>
    %cst_34 = arith.constant 5.000000e-01 : f32
    %196 = vector.broadcast %cst_34 : f32 to vector<16x128xf32>
    %197 = arith.mulf %196, %195 : vector<16x128xf32>
    %cst_35 = arith.constant 5.000000e-01 : f32
    %198 = vector.broadcast %cst_35 : f32 to vector<16x128xf32>
    %199 = arith.addf %197, %198 : vector<16x128xf32>
    %200 = arith.select %16, %195, %199 : vector<16x128xi1>, vector<16x128xf32>
    %201 = vector.extract_strided_slice %200 {offsets = [0, 0], sizes = [16, 32], strides = [1, 1]} : vector<16x128xf32> to vector<16x32xf32>
    %202 = vector.extract_strided_slice %200 {offsets = [0, 32], sizes = [16, 32], strides = [1, 1]} : vector<16x128xf32> to vector<16x32xf32>
    %203 = vector.extract_strided_slice %200 {offsets = [0, 64], sizes = [16, 32], strides = [1, 1]} : vector<16x128xf32> to vector<16x32xf32>
    %204 = vector.extract_strided_slice %200 {offsets = [0, 96], sizes = [16, 32], strides = [1, 1]} : vector<16x128xf32> to vector<16x32xf32>
    %205 = arith.mulf %202, %180 : vector<16x32xf32>
    %206 = arith.mulf %201, %203 : vector<16x32xf32>
    %207 = arith.addf %205, %206 : vector<16x32xf32>
    %208 = math.tanh %207 : vector<16x32xf32>
    %209 = arith.mulf %204, %208 : vector<16x32xf32>
    %c7_i32 = arith.constant 7 : i32
    %210 = vector.broadcast %c7_i32 : i32 to vector<16x1xi32>
    %211 = arith.cmpi eq, %9, %210 : vector<16x1xi32>
    %212 = vector.shape_cast %211 : vector<16x1xi1> to vector<16x1xi1>
    %213 = vector.broadcast %212 : vector<16x1xi1> to vector<16x32xi1>
    %214 = arith.select %213, %209, %187 : vector<16x32xi1>, vector<16x32xf32>
    %cst_36 = arith.constant dense<0.000000e+00> : vector<16x256xf32>
    %215 = tpu.matmul %209, %10, %cst_36 {dimension_numbers = #tpu.dot_dimension_numbers<[1], [0], [0], [1], [0, 0, 1, 1], [], []>} : vector<16x32xf32>, vector<32x256xf32>, vector<16x256xf32> -> vector<16x256xf32>
    %216 = vector.extract_strided_slice %8 {offsets = [7, 0, 0], sizes = [1, 16, 128], strides = [1, 1, 1]} : vector<8x16x128xf32> to vector<1x16x128xf32>
    %217 = vector.shape_cast %216 : vector<1x16x128xf32> to vector<16x128xf32>
    %218 = vector.extract_strided_slice %215 {offsets = [0, 0], sizes = [16, 128], strides = [1, 1]} : vector<16x256xf32> to vector<16x128xf32>
    %219 = vector.extract_strided_slice %215 {offsets = [0, 128], sizes = [16, 128], strides = [1, 1]} : vector<16x256xf32> to vector<16x128xf32>
    %220 = arith.select %19, %218, %219 : vector<16x128xi1>, vector<16x128xf32>
    %221 = arith.addf %217, %220 : vector<16x128xf32>
    %222 = math.tanh %221 : vector<16x128xf32>
    %cst_37 = arith.constant 5.000000e-01 : f32
    %223 = vector.broadcast %cst_37 : f32 to vector<16x128xf32>
    %224 = arith.mulf %223, %222 : vector<16x128xf32>
    %cst_38 = arith.constant 5.000000e-01 : f32
    %225 = vector.broadcast %cst_38 : f32 to vector<16x128xf32>
    %226 = arith.addf %224, %225 : vector<16x128xf32>
    %227 = arith.select %16, %222, %226 : vector<16x128xi1>, vector<16x128xf32>
    %228 = vector.extract_strided_slice %227 {offsets = [0, 0], sizes = [16, 32], strides = [1, 1]} : vector<16x128xf32> to vector<16x32xf32>
    %229 = vector.extract_strided_slice %227 {offsets = [0, 32], sizes = [16, 32], strides = [1, 1]} : vector<16x128xf32> to vector<16x32xf32>
    %230 = vector.extract_strided_slice %227 {offsets = [0, 64], sizes = [16, 32], strides = [1, 1]} : vector<16x128xf32> to vector<16x32xf32>
    %231 = vector.extract_strided_slice %227 {offsets = [0, 96], sizes = [16, 32], strides = [1, 1]} : vector<16x128xf32> to vector<16x32xf32>
    %232 = arith.mulf %229, %207 : vector<16x32xf32>
    %233 = arith.mulf %228, %230 : vector<16x32xf32>
    %234 = arith.addf %232, %233 : vector<16x32xf32>
    %235 = math.tanh %234 : vector<16x32xf32>
    %236 = arith.mulf %231, %235 : vector<16x32xf32>
    %c8_i32 = arith.constant 8 : i32
    %237 = vector.broadcast %c8_i32 : i32 to vector<16x1xi32>
    %238 = arith.cmpi eq, %9, %237 : vector<16x1xi32>
    %239 = vector.shape_cast %238 : vector<16x1xi1> to vector<16x1xi1>
    %240 = vector.broadcast %239 : vector<16x1xi1> to vector<16x32xi1>
    %241 = arith.select %240, %236, %214 : vector<16x32xi1>, vector<16x32xf32>
    %cst_39 = arith.constant 0.000000e+00 : f32
    %242 = vector.broadcast %cst_39 : f32 to vector<16x32xf32>
    %243 = arith.select %22, %241, %242 : vector<16x32xi1>, vector<16x32xf32>
    %cst_40 = arith.constant 0.000000e+00 : f32
    %244 = vector.broadcast %cst_40 : f32 to vector<16x32xf32>
    %245 = arith.select %22, %244, %241 : vector<16x32xi1>, vector<16x32xf32>
    %246 = tpu.concatenate %243, %245 in 1 : vector<16x32xf32>, vector<16x32xf32> -> vector<16x64xf32>
    %c0_41 = arith.constant 0 : index
    %c0_42 = arith.constant 0 : index
    %247 = vector.load %arg6[%c0_41, %c0_42] : memref<64x96xf32, #tpu.memory_space<vmem>>, vector<64x96xf32>
    %cst_43 = arith.constant dense<0.000000e+00> : vector<16x96xf32>
    %248 = tpu.matmul %246, %247, %cst_43 {dimension_numbers = #tpu.dot_dimension_numbers<[1], [0], [0], [1], [0, 0, 1, 1], [], []>} : vector<16x64xf32>, vector<64x96xf32>, vector<16x96xf32> -> vector<16x96xf32>
    %249 = vector.extract_strided_slice %248 {offsets = [0, 0], sizes = [2, 96], strides = [1, 1]} : vector<16x96xf32> to vector<2x96xf32>
    %c0_44 = arith.constant 0 : index
    %c0_45 = arith.constant 0 : index
    %250 = vector.load %arg7[%c0_44, %c0_45] : memref<1x96xf32, #tpu.memory_space<vmem>>, vector<1x96xf32>
    %251 = vector.broadcast %250 : vector<1x96xf32> to vector<2x96xf32>
    %252 = arith.addf %249, %251 : vector<2x96xf32>
    %253 = vector.extract_strided_slice %248 {offsets = [2, 0], sizes = [8, 96], strides = [1, 1]} : vector<16x96xf32> to vector<8x96xf32>
    %254 = vector.extract_strided_slice %252 {offsets = [0, 0], sizes = [2, 32], strides = [1, 1]} : vector<2x96xf32> to vector<2x32xf32>
    %255 = vector.extract_strided_slice %252 {offsets = [0, 32], sizes = [2, 32], strides = [1, 1]} : vector<2x96xf32> to vector<2x32xf32>
    %256 = vector.extract_strided_slice %252 {offsets = [0, 64], sizes = [2, 32], strides = [1, 1]} : vector<2x96xf32> to vector<2x32xf32>
    %c0_46 = arith.constant 0 : index
    %c0_47 = arith.constant 0 : index
    %257 = vector.load %arg2[%c0_46, %c0_47] : memref<16x64xf32, #tpu.memory_space<vmem>>, vector<16x64xf32>
    %c0_48 = arith.constant 0 : index
    %c0_49 = arith.constant 0 : index
    %258 = vector.load %arg11[%c0_48, %c0_49] : memref<64x64xf32, #tpu.memory_space<vmem>>, vector<64x64xf32>
    %cst_50 = arith.constant dense<0.000000e+00> : vector<16x64xf32>
    %259 = tpu.matmul %257, %258, %cst_50 {dimension_numbers = #tpu.dot_dimension_numbers<[1], [0], [0], [1], [0, 0, 1, 1], [], []>} : vector<16x64xf32>, vector<64x64xf32>, vector<16x64xf32> -> vector<16x64xf32>
    %260 = vector.extract_strided_slice %253 {offsets = [0, 0], sizes = [8, 32], strides = [1, 1]} : vector<8x96xf32> to vector<8x32xf32>
    %c0_51 = arith.constant 0 : index
    %c0_52 = arith.constant 0 : index
    %261 = vector.load %arg8[%c0_51, %c0_52] : memref<1x32xf32, #tpu.memory_space<vmem>>, vector<1x32xf32>
    %262 = vector.broadcast %261 : vector<1x32xf32> to vector<8x32xf32>
    %263 = arith.addf %260, %262 : vector<8x32xf32>
    %c0_53 = arith.constant 0 : index
    %c0_54 = arith.constant 0 : index
    %264 = vector.load %arg15[%c0_53, %c0_54] : memref<8x2xf32, #tpu.memory_space<vmem>>, vector<8x2xf32>
    %cst_55 = arith.constant dense<0.000000e+00> : vector<8x32xf32>
    %265 = tpu.matmul %264, %254, %cst_55 {dimension_numbers = #tpu.dot_dimension_numbers<[1], [0], [0], [1], [0, 0, 1, 1], [], []>} : vector<8x2xf32>, vector<2x32xf32>, vector<8x32xf32> -> vector<8x32xf32>
    %266 = arith.addf %263, %265 : vector<8x32xf32>
    %267 = math.tanh %266 : vector<8x32xf32>
    %c0_56 = arith.constant 0 : index
    %c0_57 = arith.constant 0 : index
    %268 = vector.load %arg10[%c0_56, %c0_57] : memref<1x32xf32, #tpu.memory_space<vmem>>, vector<1x32xf32>
    %269 = vector.broadcast %268 : vector<1x32xf32> to vector<8x32xf32>
    %270 = arith.mulf %267, %269 : vector<8x32xf32>
    %cst_58 = arith.constant dense<0.000000e+00> : vector<8xf32>
    %271 = vector.multi_reduction <add>, %270, %cst_58 [1] : vector<8x32xf32> to vector<8xf32>
    %272 = vector.shape_cast %271 : vector<8xf32> to vector<8x1xf32>
    %c0_59 = arith.constant 0 : index
    %c0_60 = arith.constant 0 : index
    %273 = memref.load %arg19[%c0_59, %c0_60] : memref<1x1xf32, #tpu.memory_space<smem>>
    %274 = vector.broadcast %273 : f32 to vector<8x1xf32>
    %275 = arith.addf %272, %274 : vector<8x1xf32>
    %276 = vector.shape_cast %275 : vector<8x1xf32> to vector<1x8x1xf32>
    %cst_61 = arith.constant dense<0xFF800000> : vector<1xf32>
    %277 = vector.multi_reduction <maximumf>, %276, %cst_61 [1, 2] : vector<1x8x1xf32> to vector<1xf32>
    %278 = vector.shape_cast %277 : vector<1xf32> to vector<1x1x1xf32>
    %279 = vector.extract %278[0, 0, 0] : f32 from vector<1x1x1xf32>
    %280 = vector.broadcast %279 : f32 to vector<1x1xf32>
    %281 = vector.broadcast %280 : vector<1x1xf32> to vector<8x1xf32>
    %282 = arith.subf %275, %281 : vector<8x1xf32>
    %283 = math.exp %282 : vector<8x1xf32>
    %c0_62 = arith.constant 0 : index
    %c0_63 = arith.constant 0 : index
    %284 = vector.load %arg16[%c0_62, %c0_63] : memref<2x8xf32, #tpu.memory_space<vmem>>, vector<2x8xf32>
    %285 = vector.extract_strided_slice %253 {offsets = [0, 32], sizes = [8, 64], strides = [1, 1]} : vector<8x96xf32> to vector<8x64xf32>
    %286 = vector.broadcast %283 : vector<8x1xf32> to vector<8x64xf32>
    %287 = arith.mulf %286, %285 : vector<8x64xf32>
    %cst_64 = arith.constant dense<0.000000e+00> : vector<2x64xf32>
    %288 = tpu.matmul %284, %287, %cst_64 {dimension_numbers = #tpu.dot_dimension_numbers<[1], [0], [0], [1], [0, 0, 1, 1], [], []>} : vector<2x8xf32>, vector<8x64xf32>, vector<2x64xf32> -> vector<2x64xf32>
    %c0_65 = arith.constant 0 : index
    %c0_66 = arith.constant 0 : index
    %289 = vector.load %arg16[%c0_65, %c0_66] : memref<2x8xf32, #tpu.memory_space<vmem>>, vector<2x8xf32>
    %290 = vector.shape_cast %283 : vector<8x1xf32> to vector<8x1xf32>
    %291 = vector.broadcast %290 : vector<8x1xf32> to vector<8x32xf32>
    %cst_67 = arith.constant dense<0.000000e+00> : vector<2x32xf32>
    %292 = tpu.matmul %289, %291, %cst_67 {dimension_numbers = #tpu.dot_dimension_numbers<[1], [0], [0], [1], [0, 0, 1, 1], [], []>} : vector<2x8xf32>, vector<8x32xf32>, vector<2x32xf32> -> vector<2x32xf32>
    %cst_68 = arith.constant 1.000000e+00 : f32
    %293 = vector.broadcast %cst_68 : f32 to vector<2x32xf32>
    %294 = arith.divf %293, %292 : vector<2x32xf32>
    %295 = vector.extract_strided_slice %288 {offsets = [0, 0], sizes = [2, 32], strides = [1, 1]} : vector<2x64xf32> to vector<2x32xf32>
    %296 = arith.mulf %295, %294 : vector<2x32xf32>
    %c0_69 = arith.constant 0 : index
    %c0_70 = arith.constant 0 : index
    %297 = vector.load %arg9[%c0_69, %c0_70] : memref<1x32xf32, #tpu.memory_space<vmem>>, vector<1x32xf32>
    %298 = vector.broadcast %297 : vector<1x32xf32> to vector<2x32xf32>
    %299 = arith.addf %296, %298 : vector<2x32xf32>
    %300 = vector.extract_strided_slice %288 {offsets = [0, 32], sizes = [2, 32], strides = [1, 1]} : vector<2x64xf32> to vector<2x32xf32>
    %301 = arith.mulf %300, %294 : vector<2x32xf32>
    %302 = vector.extract_strided_slice %259 {offsets = [0, 0], sizes = [16, 32], strides = [1, 1]} : vector<16x64xf32> to vector<16x32xf32>
    %c0_71 = arith.constant 0 : index
    %c0_72 = arith.constant 0 : index
    %303 = vector.load %arg12[%c0_71, %c0_72] : memref<1x32xf32, #tpu.memory_space<vmem>>, vector<1x32xf32>
    %304 = vector.broadcast %303 : vector<1x32xf32> to vector<16x32xf32>
    %305 = arith.addf %302, %304 : vector<16x32xf32>
    %c0_73 = arith.constant 0 : index
    %c0_74 = arith.constant 0 : index
    %306 = vector.load %arg17[%c0_73, %c0_74] : memref<16x2xf32, #tpu.memory_space<vmem>>, vector<16x2xf32>
    %307 = arith.addf %255, %299 : vector<2x32xf32>
    %cst_75 = arith.constant dense<0.000000e+00> : vector<16x32xf32>
    %308 = tpu.matmul %306, %307, %cst_75 {dimension_numbers = #tpu.dot_dimension_numbers<[1], [0], [0], [1], [0, 0, 1, 1], [], []>} : vector<16x2xf32>, vector<2x32xf32>, vector<16x32xf32> -> vector<16x32xf32>
    %309 = arith.addf %305, %308 : vector<16x32xf32>
    %310 = math.tanh %309 : vector<16x32xf32>
    %c0_76 = arith.constant 0 : index
    %c0_77 = arith.constant 0 : index
    %311 = vector.load %arg13[%c0_76, %c0_77] : memref<1x32xf32, #tpu.memory_space<vmem>>, vector<1x32xf32>
    %312 = vector.broadcast %311 : vector<1x32xf32> to vector<16x32xf32>
    %313 = arith.mulf %310, %312 : vector<16x32xf32>
    %cst_78 = arith.constant dense<0.000000e+00> : vector<16xf32>
    %314 = vector.multi_reduction <add>, %313, %cst_78 [1] : vector<16x32xf32> to vector<16xf32>
    %315 = vector.shape_cast %314 : vector<16xf32> to vector<16x1xf32>
    %c0_79 = arith.constant 0 : index
    %c0_80 = arith.constant 0 : index
    %316 = memref.load %arg20[%c0_79, %c0_80] : memref<1x1xf32, #tpu.memory_space<smem>>
    %317 = vector.broadcast %316 : f32 to vector<16x1xf32>
    %318 = arith.addf %315, %317 : vector<16x1xf32>
    %319 = vector.shape_cast %318 : vector<16x1xf32> to vector<1x16x1xf32>
    %cst_81 = arith.constant dense<0xFF800000> : vector<1xf32>
    %320 = vector.multi_reduction <maximumf>, %319, %cst_81 [1, 2] : vector<1x16x1xf32> to vector<1xf32>
    %321 = vector.shape_cast %320 : vector<1xf32> to vector<1x1x1xf32>
    %322 = vector.extract %321[0, 0, 0] : f32 from vector<1x1x1xf32>
    %323 = vector.broadcast %322 : f32 to vector<1x1xf32>
    %324 = vector.broadcast %323 : vector<1x1xf32> to vector<16x1xf32>
    %325 = arith.subf %318, %324 : vector<16x1xf32>
    %326 = math.exp %325 : vector<16x1xf32>
    %c0_82 = arith.constant 0 : index
    %c0_83 = arith.constant 0 : index
    %327 = vector.load %arg18[%c0_82, %c0_83] : memref<2x16xf32, #tpu.memory_space<vmem>>, vector<2x16xf32>
    %328 = vector.extract_strided_slice %259 {offsets = [0, 32], sizes = [16, 32], strides = [1, 1]} : vector<16x64xf32> to vector<16x32xf32>
    %329 = vector.broadcast %326 : vector<16x1xf32> to vector<16x32xf32>
    %330 = arith.mulf %329, %328 : vector<16x32xf32>
    %cst_84 = arith.constant dense<0.000000e+00> : vector<2x32xf32>
    %331 = tpu.matmul %327, %330, %cst_84 {dimension_numbers = #tpu.dot_dimension_numbers<[1], [0], [0], [1], [0, 0, 1, 1], [], []>} : vector<2x16xf32>, vector<16x32xf32>, vector<2x32xf32> -> vector<2x32xf32>
    %c0_85 = arith.constant 0 : index
    %c0_86 = arith.constant 0 : index
    %332 = vector.load %arg18[%c0_85, %c0_86] : memref<2x16xf32, #tpu.memory_space<vmem>>, vector<2x16xf32>
    %333 = vector.shape_cast %326 : vector<16x1xf32> to vector<16x1xf32>
    %334 = vector.broadcast %333 : vector<16x1xf32> to vector<16x32xf32>
    %cst_87 = arith.constant dense<0.000000e+00> : vector<2x32xf32>
    %335 = tpu.matmul %332, %334, %cst_87 {dimension_numbers = #tpu.dot_dimension_numbers<[1], [0], [0], [1], [0, 0, 1, 1], [], []>} : vector<2x16xf32>, vector<16x32xf32>, vector<2x32xf32> -> vector<2x32xf32>
    %cst_88 = arith.constant 1.000000e+00 : f32
    %336 = vector.broadcast %cst_88 : f32 to vector<2x32xf32>
    %337 = arith.divf %336, %335 : vector<2x32xf32>
    %338 = arith.mulf %331, %337 : vector<2x32xf32>
    %339 = arith.addf %256, %301 : vector<2x32xf32>
    %340 = arith.addf %339, %338 : vector<2x32xf32>
    %c0_89 = arith.constant 0 : index
    %c0_90 = arith.constant 0 : index
    %341 = vector.load %arg14[%c0_89, %c0_90] : memref<1x32xf32, #tpu.memory_space<vmem>>, vector<1x32xf32>
    %342 = vector.broadcast %341 : vector<1x32xf32> to vector<2x32xf32>
    %343 = arith.addf %340, %342 : vector<2x32xf32>
    %344 = math.tanh %343 : vector<2x32xf32>
    %c0_91 = arith.constant 0 : index
    %c0_92 = arith.constant 0 : index
    %345 = vector.load %arg21[%c0_91, %c0_92] : memref<2x32xf32, #tpu.memory_space<vmem>>, vector<2x32xf32>
    tpu.vector_store %arg21[%c0_91, %c0_92], %344 {strides = array<i32>} : memref<2x32xf32, #tpu.memory_space<vmem>>, vector<2x32xf32>,
    return
  }
}

</mosaic_0001>

<llo_original>
// kernel: hciae_forward.1
$region0: #{hciae_forward.1}
  #allocation0 [shape = 'u32[]', space=smem, size = 0x4, offset = 0x4, fixed_abs, tag = 'smem constant byte address 0x4 - core index']
  #allocation1 [shape = 'u32[144,128]{1,0:T(1,128)}', space=vmem, size = 0x12000, scoped, tag = 'internal scratch']
  #allocation2 [shape = 'f32[1,1]{1,0:T(1,128)S(6)}', space=smem, size = 0x200, scoped, tag = 'scoped memory for hciae_forward.1']
  #allocation3 [shape = 'f32[1,1]{1,0:T(1,128)S(6)}', space=smem, size = 0x200, scoped, tag = 'scoped memory for hciae_forward.1']
  %s0 = inlined_call_operand.vmem [shape: f32[8,16,64], index: 0, kind: input, shape index: {}]
  %s1 = inlined_call_operand.vmem [shape: s32[16,1], index: 1, kind: input, shape index: {}]
  %s2 = inlined_call_operand.vmem [shape: f32[16,64], index: 2, kind: input, shape index: {}]
  %s3 = inlined_call_operand.vmem [shape: f32[64,128], index: 3, kind: input, shape index: {}]
  %s4 = inlined_call_operand.vmem [shape: f32[16,128], index: 4, kind: input, shape index: {}]
  %s5 = inlined_call_operand.vmem [shape: f32[32,256], index: 5, kind: input, shape index: {}]
  %s6 = inlined_call_operand.vmem [shape: f32[64,96], index: 6, kind: input, shape index: {}]
  %s7 = inlined_call_operand.vmem [shape: f32[1,96], index: 7, kind: input, shape index: {}]
  %s8 = inlined_call_operand.vmem [shape: f32[1,32], index: 8, kind: input, shape index: {}]
  %s9 = inlined_call_operand.vmem [shape: f32[1,32], index: 9, kind: input, shape index: {}]
  %s10 = inlined_call_operand.vmem [shape: f32[1,32], index: 10, kind: input, shape index: {}]
  %s11 = inlined_call_operand.vmem [shape: f32[64,64], index: 11, kind: input, shape index: {}]
  %s12 = inlined_call_operand.vmem [shape: f32[1,32], index: 12, kind: input, shape index: {}]
  %s13 = inlined_call_operand.vmem [shape: f32[1,32], index: 13, kind: input, shape index: {}]
  %s14 = inlined_call_operand.vmem [shape: f32[1,32], index: 14, kind: input, shape index: {}]
  %s15 = inlined_call_operand.vmem [shape: f32[8,2], index: 15, kind: input, shape index: {}]
  %s16 = inlined_call_operand.vmem [shape: f32[2,8], index: 16, kind: input, shape index: {}]
  %s17 = inlined_call_operand.vmem [shape: f32[16,2], index: 17, kind: input, shape index: {}]
  %s18 = inlined_call_operand.vmem [shape: f32[2,16], index: 18, kind: input, shape index: {}]
  %s19 = inlined_call_operand.<no memory space> [shape: f32[1,1], index: 19, kind: input, shape index: {}]
  %s20 = inlined_call_operand.<no memory space> [shape: f32[1,1], index: 20, kind: input, shape index: {}]
  %s21 = inlined_call_operand.hbm [shape: f32[2,32], index: 21, kind: output, shape index: {}]
  %s22 = sld [smem:[#allocation0]]
  $region94: #{hciae_forward.1} parent=0
    _
  %s24 = ssub.s32 1, %s22
  %s25 = scalar_select 0, %s24, %s22
  %26 = sst [smem:[#allocation2]] %s19
  %27 = sst [smem:[#allocation3]] %s20
  $region1: #{hciae_forward.1} parent=0
    #allocation4 [shape = 'u8[1024]{0}', space=vmem, size = 0x400, scoped, tag = 'output window, operand 0, single buffered']
    #allocation5 [shape = 's32[1]{0}', space=sflag, size = 0x4, scoped, tag = 'scoped memory for hciae_forward.1']
    %28 = vsyncpa [#allocation5], 0
    // Predicated region
    $region2: #{hciae_forward.1} parent=1 // pred_check
      _
    $region3: #{hciae_forward.1} parent=1 // pred_check_branch
      %30 = sbr.rel (0) target = $region5
    $region4: #{hciae_forward.1} parent=1 // pred_region
      _
    $region5: #{hciae_forward.1} parent=1 // pred_fallthru
      _
    // Predicated region
    $region6: #{hciae_forward.1} parent=1 // pred_check
      _
    $region7: #{hciae_forward.1} parent=1 // pred_check_branch
      %32 = sbr.rel (0) target = $region9
    $region8: #{hciae_forward.1} parent=1 // pred_region
      _
    $region9: #{hciae_forward.1} parent=1 // pred_fallthru
      _
    // Predicated region
    $region10: #{hciae_forward.1} parent=1 // pred_check
      _
    $region11: #{hciae_forward.1} parent=1 // pred_check_branch
      %34 = sbr.rel (0) target = $region13
    $region12: #{hciae_forward.1} parent=1 // pred_region
      _
    $region13: #{hciae_forward.1} parent=1 // pred_fallthru
      _
    // Predicated region
    $region14: #{hciae_forward.1} parent=1 // pred_check
      _
    $region15: #{hciae_forward.1} parent=1 // pred_check_branch
      %36 = sbr.rel (0) target = $region17
    $region16: #{hciae_forward.1} parent=1 // pred_region
      _
    $region17: #{hciae_forward.1} parent=1 // pred_fallthru
      _
    // Predicated region
    $region18: #{hciae_forward.1} parent=1 // pred_check
      _
    $region19: #{hciae_forward.1} parent=1 // pred_check_branch
      %38 = sbr.rel (0) target = $region21
    $region20: #{hciae_forward.1} parent=1 // pred_region
      _
    $region21: #{hciae_forward.1} parent=1 // pred_fallthru
      _
    // Predicated region
    $region22: #{hciae_forward.1} parent=1 // pred_check
      _
    $region23: #{hciae_forward.1} parent=1 // pred_check_branch
      %40 = sbr.rel (0) target = $region25
    $region24: #{hciae_forward.1} parent=1 // pred_region
      _
    $region25: #{hciae_forward.1} parent=1 // pred_fallthru
      _
    // Predicated region
    $region26: #{hciae_forward.1} parent=1 // pred_check
      _
    $region27: #{hciae_forward.1} parent=1 // pred_check_branch
      %42 = sbr.rel (0) target = $region29
    $region28: #{hciae_forward.1} parent=1 // pred_region
      _
    $region29: #{hciae_forward.1} parent=1 // pred_fallthru
      _
    // Predicated region
    $region30: #{hciae_forward.1} parent=1 // pred_check
      _
    $region31: #{hciae_forward.1} parent=1 // pred_check_branch
      %44 = sbr.rel (0) target = $region33
    $region32: #{hciae_forward.1} parent=1 // pred_region
      _
    $region33: #{hciae_forward.1} parent=1 // pred_fallthru
      _
    // Predicated region
    $region34: #{hciae_forward.1} parent=1 // pred_check
      _
    $region35: #{hciae_forward.1} parent=1 // pred_check_branch
      %46 = sbr.rel (0) target = $region37
    $region36: #{hciae_forward.1} parent=1 // pred_region
      _
    $region37: #{hciae_forward.1} parent=1 // pred_fallthru
      _
    // Predicated region
    $region38: #{hciae_forward.1} parent=1 // pred_check
      _
    $region39: #{hciae_forward.1} parent=1 // pred_check_branch
      %48 = sbr.rel (0) target = $region41
    $region40: #{hciae_forward.1} parent=1 // pred_region
      _
    $region41: #{hciae_forward.1} parent=1 // pred_fallthru
      _
    // Predicated region
    $region42: #{hciae_forward.1} parent=1 // pred_check
      _
    $region43: #{hciae_forward.1} parent=1 // pred_check_branch
      %50 = sbr.rel (0) target = $region45
    $region44: #{hciae_forward.1} parent=1 // pred_region
      _
    $region45: #{hciae_forward.1} parent=1 // pred_fallthru
      _
    // Predicated region
    $region46: #{hciae_forward.1} parent=1 // pred_check
      _
    $region47: #{hciae_forward.1} parent=1 // pred_check_branch
      %52 = sbr.rel (0) target = $region49
    $region48: #{hciae_forward.1} parent=1 // pred_region
      _
    $region49: #{hciae_forward.1} parent=1 // pred_fallthru
      _
    // Predicated region
    $region50: #{hciae_forward.1} parent=1 // pred_check
      _
    $region51: #{hciae_forward.1} parent=1 // pred_check_branch
      %54 = sbr.rel (0) target = $region53
    $region52: #{hciae_forward.1} parent=1 // pred_region
      _
    $region53: #{hciae_forward.1} parent=1 // pred_fallthru
      _
    // Predicated region
    $region54: #{hciae_forward.1} parent=1 // pred_check
      _
    $region55: #{hciae_forward.1} parent=1 // pred_check_branch
      %56 = sbr.rel (0) target = $region57
    $region56: #{hciae_forward.1} parent=1 // pred_region
      _
    $region57: #{hciae_forward.1} parent=1 // pred_fallthru
      _
    // Predicated region
    $region58: #{hciae_forward.1} parent=1 // pred_check
      _
    $region59: #{hciae_forward.1} parent=1 // pred_check_branch
      %58 = sbr.rel (0) target = $region61
    $region60: #{hciae_forward.1} parent=1 // pred_region
      _
    $region61: #{hciae_forward.1} parent=1 // pred_fallthru
      _
    // Predicated region
    $region62: #{hciae_forward.1} parent=1 // pred_check
      _
    $region63: #{hciae_forward.1} parent=1 // pred_check_branch
      %60 = sbr.rel (0) target = $region65
    $region64: #{hciae_forward.1} parent=1 // pred_region
      _
    $region65: #{hciae_forward.1} parent=1 // pred_fallthru
      _
    // Predicated region
    $region66: #{hciae_forward.1} parent=1 // pred_check
      _
    $region67: #{hciae_forward.1} parent=1 // pred_check_branch
      %62 = sbr.rel (0) target = $region69
    $region68: #{hciae_forward.1} parent=1 // pred_region
      _
    $region69: #{hciae_forward.1} parent=1 // pred_fallthru
      _
    // Predicated region
    $region70: #{hciae_forward.1} parent=1 // pred_check
      _
    $region71: #{hciae_forward.1} parent=1 // pred_check_branch
      %64 = sbr.rel (0) target = $region73
    $region72: #{hciae_forward.1} parent=1 // pred_region
      _
    $region73: #{hciae_forward.1} parent=1 // pred_fallthru
      _
    // Predicated region
    $region74: #{hciae_forward.1} parent=1 // pred_check
      _
    $region75: #{hciae_forward.1} parent=1 // pred_check_branch
      %66 = sbr.rel (0) target = $region77
    $region76: #{hciae_forward.1} parent=1 // pred_region
      _
    $region77: #{hciae_forward.1} parent=1 // pred_fallthru
      _
    // Predicated region
    $region78: #{hciae_forward.1} parent=1 // pred_check
      _
    $region79: #{hciae_forward.1} parent=1 // pred_check_branch
      %68 = sbr.rel (0) target = $region81
    $region80: #{hciae_forward.1} parent=1 // pred_region
      _
    $region81: #{hciae_forward.1} parent=1 // pred_fallthru
      _
    // Predicated region
    $region82: #{hciae_forward.1} parent=1 // pred_check
      _
    $region83: #{hciae_forward.1} parent=1 // pred_check_branch
      %70 = sbr.rel (0) target = $region85
    $region84: #{hciae_forward.1} parent=1 // pred_region
      _
    $region85: #{hciae_forward.1} parent=1 // pred_fallthru
      _
    %v71 = vld [vmem:[%s0] sm:$0xff]
    %v72 = vld [vmem:[%s0 + $0x8] sm:$0xff]
    %v73 = vld [vmem:[%s0 + $0x10] sm:$0xff]
    %v74 = vld [vmem:[%s0 + $0x18] sm:$0xff]
    %v75 = vld [vmem:[%s0 + $0x20] sm:$0xff]
    %v76 = vld [vmem:[%s0 + $0x28] sm:$0xff]
    %v77 = vld [vmem:[%s0 + $0x30] sm:$0xff]
    %v78 = vld [vmem:[%s0 + $0x38] sm:$0xff]
    %v79 = vld [vmem:[%s0 + $0x40] sm:$0xff]
    %v80 = vld [vmem:[%s0 + $0x48] sm:$0xff]
    %v81 = vld [vmem:[%s0 + $0x50] sm:$0xff]
    %v82 = vld [vmem:[%s0 + $0x58] sm:$0xff]
    %v83 = vld [vmem:[%s0 + $0x60] sm:$0xff]
    %v84 = vld [vmem:[%s0 + $0x68] sm:$0xff]
    %v85 = vld [vmem:[%s0 + $0x70] sm:$0xff]
    %v86 = vld [vmem:[%s0 + $0x78] sm:$0xff]
    %v87 = vld [vmem:[%s3] sm:$0xff]
    %v88 = vld [vmem:[%s3 + $0x8] sm:$0xff]
    %v89 = vld [vmem:[%s3 + $0x10] sm:$0xff]
    %v90 = vld [vmem:[%s3 + $0x18] sm:$0xff]
    %v91 = vld [vmem:[%s3 + $0x20] sm:$0xff]
    %v92 = vld [vmem:[%s3 + $0x28] sm:$0xff]
    %v93 = vld [vmem:[%s3 + $0x30] sm:$0xff]
    %v94 = vld [vmem:[%s3 + $0x38] sm:$0xff]
    %vm95 = vcmask 523264
    %v97 = vsel %vm95, %v71, 0
    %v100 = vsel %vm95, %v72, 0
    %v103 = vsel %vm95, %v73, 0
    %v106 = vsel %vm95, %v74, 0
    %v109 = vsel %vm95, %v75, 0
    %v112 = vsel %vm95, %v76, 0
    %v115 = vsel %vm95, %v77, 0
    %v118 = vsel %vm95, %v78, 0
    %v121 = vsel %vm95, %v79, 0
    %v124 = vsel %vm95, %v80, 0
    %v127 = vsel %vm95, %v81, 0
    %v130 = vsel %vm95, %v82, 0
    %v133 = vsel %vm95, %v83, 0
    %v136 = vsel %vm95, %v84, 0
    %v139 = vsel %vm95, %v85, 0
    %v142 = vsel %vm95, %v86, 0
    %144 = vmatprep.subr.mxu0 0.0
    %145 = vmatpush1.msra.mxu0 0.0
    %146 = vmatprep.subr.mxu0 0.0
    %147 = vmatpush1.msra.mxu0 0.0
    %148 = vmatprep.subr.mxu0 0.0
    %149 = vmatpush1.msra.mxu0 0.0
    %150 = vmatprep.subr.mxu0 0.0
    %151 = vmatpush1.msra.mxu0 0.0
    %152 = vmatprep.subr.mxu0 0.0
    %153 = vmatpush1.msra.mxu0 0.0
    %154 = vmatprep.subr.mxu0 0.0
    %155 = vmatpush1.msra.mxu0 0.0
    %156 = vmatprep.subr.mxu0 0.0
    %157 = vmatpush1.msra.mxu0 0.0
    %158 = vmatprep.subr.mxu0 0.0
    %159 = vmatpush1.msra.mxu0 0.0
    %160 = vmatprep.subr.mxu0 0.0
    %161 = vmatpush1.msra.mxu0 %v94
    %162 = vmatprep.subr.mxu0 0.0
    %163 = vmatpush1.msra.mxu0 %v93
    %164 = vmatprep.subr.mxu0 0.0
    %165 = vmatpush1.msra.mxu0 %v92
    %166 = vmatprep.subr.mxu0 0.0
    %167 = vmatpush1.msra.mxu0 %v91
    %168 = vmatprep.subr.mxu0 0.0
    %169 = vmatpush1.msra.mxu0 %v90
    %170 = vmatprep.subr.mxu0 0.0
    %171 = vmatpush1.msra.mxu0 %v89
    %172 = vmatprep.subr.mxu0 0.0
    %173 = vmatpush1.msra.mxu0 %v88
    %174 = vmatprep.subr.mxu0 0.0
    %175 = vmatpush1.msra.mxu0 %v87
    %176 = vmatprep.subr.mxu0 0.0
    %177 = vmatpush2.msra.mxu0 0.0
    %178 = vmatprep.subr.mxu0 0.0
    %179 = vmatpush2.msra.mxu0 0.0
    %180 = vmatprep.subr.mxu0 0.0
    %181 = vmatpush2.msra.mxu0 0.0
    %182 = vmatprep.subr.mxu0 0.0
    %183 = vmatpush2.msra.mxu0 0.0
    %184 = vmatprep.subr.mxu0 0.0
    %185 = vmatpush2.msra.mxu0 0.0
    %186 = vmatprep.subr.mxu0 0.0
    %187 = vmatpush2.msra.mxu0 0.0
    %188 = vmatprep.subr.mxu0 0.0
    %189 = vmatpush2.msra.mxu0 0.0
    %190 = vmatprep.subr.mxu0 0.0
    %191 = vmatpush2.msra.mxu0 0.0
    %192 = vmatprep.subr.mxu0 0.0
    %193 = vmatpush2.msra.mxu0 0.0
    %194 = vmatprep.subr.mxu0 0.0
    %195 = vmatpush2.msra.mxu0 0.0
    %196 = vmatprep.subr.mxu0 0.0
    %197 = vmatpush2.msra.mxu0 0.0
    %198 = vmatprep.subr.mxu0 0.0
    %199 = vmatpush2.msra.mxu0 0.0
    %200 = vmatprep.subr.mxu0 0.0
    %201 = vmatpush2.msra.mxu0 0.0
    %202 = vmatprep.subr.mxu0 0.0
    %203 = vmatpush2.msra.mxu0 0.0
    %204 = vmatprep.subr.mxu0 0.0
    %205 = vmatpush2.msra.mxu0 0.0
    %206 = vmatprep.subr.mxu0 0.0
    %207 = vmatpush2.msra.mxu0 0.0
    %208 = vmatprep.mubr.f32.mxu0 0.0
    %209 = vmatmul.mubr.f32.gmra.mxu0 %v97
    %v210 = vpop.f32.mrf.mxu0
    %v211 = vadd.f32 0.0, %v210
    %v212 = vpop.f32.mrf.mxu0
    %213 = vmatprep.mubr.f32.mxu0 0.0
    %214 = vmatmul.mubr.f32.gmra.mxu0 %v100
    %v215 = vpop.f32.mrf.mxu0
    %v216 = vadd.f32 0.0, %v215
    %v217 = vpop.f32.mrf.mxu0
    %218 = vmatprep.mubr.f32.mxu0 0.0
    %219 = vmatmul.mubr.f32.gmra.mxu0 %v103
    %v220 = vpop.f32.mrf.mxu0
    %v221 = vadd.f32 0.0, %v220
    %v222 = vpop.f32.mrf.mxu0
    %223 = vmatprep.mubr.f32.mxu0 0.0
    %224 = vmatmul.mubr.f32.gmra.mxu0 %v106
    %v225 = vpop.f32.mrf.mxu0
    %v226 = vadd.f32 0.0, %v225
    %v227 = vpop.f32.mrf.mxu0
    %228 = vmatprep.mubr.f32.mxu0 0.0
    %229 = vmatmul.mubr.f32.gmra.mxu0 %v109
    %v230 = vpop.f32.mrf.mxu0
    %v231 = vadd.f32 0.0, %v230
    %v232 = vpop.f32.mrf.mxu0
    %233 = vmatprep.mubr.f32.mxu0 0.0
    %234 = vmatmul.mubr.f32.gmra.mxu0 %v112
    %v235 = vpop.f32.mrf.mxu0
    %v236 = vadd.f32 0.0, %v235
    %v237 = vpop.f32.mrf.mxu0
    %238 = vmatprep.mubr.f32.mxu0 0.0
    %239 = vmatmul.mubr.f32.gmra.mxu0 %v115
    %v240 = vpop.f32.mrf.mxu0
    %v241 = vadd.f32 0.0, %v240
    %v242 = vpop.f32.mrf.mxu0
    %243 = vmatprep.mubr.f32.mxu0 0.0
    %244 = vmatmul.mubr.f32.gmra.mxu0 %v118
    %v245 = vpop.f32.mrf.mxu0
    %v246 = vadd.f32 0.0, %v245
    %v247 = vpop.f32.mrf.mxu0
    %248 = vmatprep.mubr.f32.mxu0 0.0
    %249 = vmatmul.mubr.f32.gmra.mxu0 %v121
    %v250 = vpop.f32.mrf.mxu0
    %v251 = vadd.f32 0.0, %v250
    %v252 = vpop.f32.mrf.mxu0
    %253 = vmatprep.mubr.f32.mxu0 0.0
    %254 = vmatmul.mubr.f32.gmra.mxu0 %v124
    %v255 = vpop.f32.mrf.mxu0
    %v256 = vadd.f32 0.0, %v255
    %v257 = vpop.f32.mrf.mxu0
    %258 = vmatprep.mubr.f32.mxu0 0.0
    %259 = vmatmul.mubr.f32.gmra.mxu0 %v127
    %v260 = vpop.f32.mrf.mxu0
    %v261 = vadd.f32 0.0, %v260
    %v262 = vpop.f32.mrf.mxu0
    %263 = vmatprep.mubr.f32.mxu0 0.0
    %264 = vmatmul.mubr.f32.gmra.mxu0 %v130
    %v265 = vpop.f32.mrf.mxu0
    %v266 = vadd.f32 0.0, %v265
    %v267 = vpop.f32.mrf.mxu0
    %268 = vmatprep.mubr.f32.mxu0 0.0
    %269 = vmatmul.mubr.f32.gmra.mxu0 %v133
    %v270 = vpop.f32.mrf.mxu0
    %v271 = vadd.f32 0.0, %v270
    %v272 = vpop.f32.mrf.mxu0
    %273 = vmatprep.mubr.f32.mxu0 0.0
    %274 = vmatmul.mubr.f32.gmra.mxu0 %v136
    %v275 = vpop.f32.mrf.mxu0
    %v276 = vadd.f32 0.0, %v275
    %v277 = vpop.f32.mrf.mxu0
    %278 = vmatprep.mubr.f32.mxu0 0.0
    %279 = vmatmul.mubr.f32.gmra.mxu0 %v139
    %v280 = vpop.f32.mrf.mxu0
    %v281 = vadd.f32 0.0, %v280
    %v282 = vpop.f32.mrf.mxu0
    %283 = vmatprep.mubr.f32.mxu0 0.0
    %284 = vmatmul.mubr.f32.gmra.mxu0 %v142
    %v285 = vpop.f32.mrf.mxu0
    %v286 = vadd.f32 0.0, %v285
    %v287 = vpop.f32.mrf.mxu0
    %288 = vdwg.mxu0
    %v289 = vld [vmem:[%s4] sm:$0xff]
    %v290 = vld [vmem:[%s4 + $0x8] sm:$0xff]
    %v291 = vadd.f32 %v211, %v289
    %v292 = vadd.f32 %v216, %v290
    %v293 = vadd.f32 %v221, %v289
    %v294 = vadd.f32 %v226, %v290
    %v295 = vadd.f32 %v231, %v289
    %v296 = vadd.f32 %v236, %v290
    %v297 = vadd.f32 %v241, %v289
    %v298 = vadd.f32 %v246, %v290
    %v299 = vadd.f32 %v251, %v289
    %v300 = vadd.f32 %v256, %v290
    %v301 = vadd.f32 %v261, %v289
    %v302 = vadd.f32 %v266, %v290
    %v303 = vadd.f32 %v271, %v289
    %v304 = vadd.f32 %v276, %v290
    %v305 = vadd.f32 %v281, %v289
    %v306 = vadd.f32 %v286, %v290
    %v307 = vld [vmem:[%s1] sm:$0xff]
    %v308 = vld [vmem:[%s1 + $0x8] sm:$0xff]
    %v309 = vld [vmem:[%s5] sm:$0xff]
    %v310 = vld [vmem:[%s5 + $0x8] sm:$0xff]
    %v311 = vld [vmem:[%s5 + $0x10] sm:$0xff]
    %v312 = vld [vmem:[%s5 + $0x18] sm:$0xff]
    %v313 = vld [vmem:[%s5 + $0x20] sm:$0xff]
    %v314 = vld [vmem:[%s5 + $0x28] sm:$0xff]
    %v315 = vld [vmem:[%s5 + $0x30] sm:$0xff]
    %v316 = vld [vmem:[%s5 + $0x38] sm:$0xff]
    %v317 = vlaneseq
    %v318 = vand.u32 %v317, 127
    %vm319 = vcmp.ge.s32.totalorder %v318, 64
    %vm320 = vcmp.lt.s32.totalorder %v318, 96
    %vm321 = vmand %vm319, %vm320
    %v322 = vlaneseq
    %v323 = vshrl.u32 %v322, 7
    %v324 = vadd.s32 %v323, 8
    %vm325 = vcmp.lt.s32.totalorder %v323, 2
    %vm326 = vcmp.lt.s32.totalorder %v324, 2
    %vm327 = vcmask 261120
    %v329 = vsel %vm327, 0.0, 0
    %331 = vmatprep.subr.mxu0 0.0
    %332 = vmatpush1.msra.mxu0 0.0
    %333 = vmatprep.subr.mxu0 0.0
    %334 = vmatpush1.msra.mxu0 0.0
    %335 = vmatprep.subr.mxu0 0.0
    %336 = vmatpush1.msra.mxu0 0.0
    %337 = vmatprep.subr.mxu0 0.0
    %338 = vmatpush1.msra.mxu0 0.0
    %339 = vmatprep.subr.mxu0 0.0
    %340 = vmatpush1.msra.mxu0 0.0
    %341 = vmatprep.subr.mxu0 0.0
    %342 = vmatpush1.msra.mxu0 0.0
    %343 = vmatprep.subr.mxu0 0.0
    %344 = vmatpush1.msra.mxu0 0.0
    %345 = vmatprep.subr.mxu0 0.0
    %346 = vmatpush1.msra.mxu0 0.0
    %347 = vmatprep.subr.mxu0 0.0
    %348 = vmatpush1.msra.mxu0 0.0
    %349 = vmatprep.subr.mxu0 0.0
    %350 = vmatpush1.msra.mxu0 0.0
    %351 = vmatprep.subr.mxu0 0.0
    %352 = vmatpush1.msra.mxu0 0.0
    %353 = vmatprep.subr.mxu0 0.0
    %354 = vmatpush1.msra.mxu0 0.0
    %355 = vmatprep.subr.mxu0 %v316
    %356 = vmatpush1.msra.mxu0 %v315
    %357 = vmatprep.subr.mxu0 %v314
    %358 = vmatpush1.msra.mxu0 %v313
    %359 = vmatprep.subr.mxu0 %v312
    %360 = vmatpush1.msra.mxu0 %v311
    %361 = vmatprep.subr.mxu0 %v310
    %362 = vmatpush1.msra.mxu0 %v309
    %363 = vmatprep.subr.mxu0 0.0
    %364 = vmatpush2.msra.mxu0 0.0
    %365 = vmatprep.subr.mxu0 0.0
    %366 = vmatpush2.msra.mxu0 0.0
    %367 = vmatprep.subr.mxu0 0.0
    %368 = vmatpush2.msra.mxu0 0.0
    %369 = vmatprep.subr.mxu0 0.0
    %370 = vmatpush2.msra.mxu0 0.0
    %371 = vmatprep.subr.mxu0 0.0
    %372 = vmatpush2.msra.mxu0 0.0
    %373 = vmatprep.subr.mxu0 0.0
    %374 = vmatpush2.msra.mxu0 0.0
    %375 = vmatprep.subr.mxu0 0.0
    %376 = vmatpush2.msra.mxu0 0.0
    %377 = vmatprep.subr.mxu0 0.0
    %378 = vmatpush2.msra.mxu0 0.0
    %379 = vmatprep.subr.mxu0 0.0
    %380 = vmatpush2.msra.mxu0 0.0
    %381 = vmatprep.subr.mxu0 0.0
    %382 = vmatpush2.msra.mxu0 0.0
    %383 = vmatprep.subr.mxu0 0.0
    %384 = vmatpush2.msra.mxu0 0.0
    %385 = vmatprep.subr.mxu0 0.0
    %386 = vmatpush2.msra.mxu0 0.0
    %387 = vmatprep.subr.mxu0 0.0
    %388 = vmatpush2.msra.mxu0 0.0
    %389 = vmatprep.subr.mxu0 0.0
    %390 = vmatpush2.msra.mxu0 0.0
    %391 = vmatprep.subr.mxu0 0.0
    %392 = vmatpush2.msra.mxu0 0.0
    %393 = vmatprep.subr.mxu0 0.0
    %394 = vmatpush2.msra.mxu0 0.0
    %395 = vmatprep.mubr.f32.mxu0 0.0
    %396 = vmatmul.mubr.f32.gmra.mxu0 %v329
    %v397 = vpop.f32.mrf.mxu0
    %v398 = vadd.f32 0.0, %v397
    %v399 = vpop.f32.mrf.mxu0
    %v400 = vadd.f32 0.0, %v399
    %401 = vmatprep.mubr.f32.mxu0 0.0
    %402 = vmatmul.mubr.f32.gmra.mxu0 %v329
    %v403 = vpop.f32.mrf.mxu0
    %v404 = vadd.f32 0.0, %v403
    %v405 = vpop.f32.mrf.mxu0
    %v406 = vadd.f32 0.0, %v405
    %407 = vdwg.mxu0
    %v408 = vsel %vm325, %v398, %v400
    %v409 = vsel %vm326, %v404, %v406
    %v410 = vadd.f32 %v291, %v408
    %v411 = vadd.f32 %v292, %v409
    %v412 = vtanh.pop %v410
    %v413 = vtanh.pop %v411
    %v414 = vmul.f32 %v412, 0.5
    %v415 = vmul.f32 %v413, 0.5
    %v416 = vadd.f32 %v414, 0.5
    %v417 = vadd.f32 %v415, 0.5
    %v418 = vsel %vm321, %v412, %v416
    %v419 = vsel %vm321, %v413, %v417
    %v420 = vmul.f32 %v418, 0.0
    %v421 = vmul.f32 %v419, 0.0
    %424 = vrot.lane.b32.xlu0 %v418, 64
    %v425 = vpop.permute.xlu0 %424
    %426 = vrot.lane.b32.xlu0 %v419, 64
    %v427 = vpop.permute.xlu0 %426
    %v430 = vmul.f32 %v418, %v425
    %v431 = vmul.f32 %v419, %v427
    %434 = vrot.lane.b32.xlu0 %v430, 32
    %v435 = vpop.permute.xlu0 %434
    %436 = vrot.lane.b32.xlu0 %v431, 32
    %v437 = vpop.permute.xlu0 %436
    %v440 = vadd.f32 %v420, %v435
    %v441 = vadd.f32 %v421, %v437
    %v442 = vtanh.pop %v440
    %v443 = vtanh.pop %v441
    %446 = vrot.lane.b32.xlu0 %v442, 64
    %v447 = vpop.permute.xlu0 %446
    %448 = vrot.lane.b32.xlu0 %v443, 64
    %v449 = vpop.permute.xlu0 %448
    %v452 = vmul.f32 %v418, %v447
    %v453 = vmul.f32 %v419, %v449
    %vm454 = vcmp.eq.s32.totalorder %v307, 1
    %vm455 = vcmp.eq.s32.totalorder %v308, 1
    %v456 = vsel %vm454, 1, 0
    %v457 = vsel %vm455, 1, 0
    %458 = vset.pattern.permute.xlu0 0
    %459 = vperm.xlu0 %458, %v456
    %v460 = vpop.permute.xlu0 %459
    %461 = vset.pattern.permute.xlu0 0
    %462 = vperm.xlu0 %461, %v457
    %v463 = vpop.permute.xlu0 %462
    %vm464 = vcmp.eq.s32.totalorder %v460, 1
    %vm465 = vcmp.eq.s32.totalorder %v463, 1
    %v466 = vsel %vm464, %v452, 0.0
    %v467 = vsel %vm465, %v453, 0.0
    %470 = vrot.lane.b32.xlu0 %v452, 32
    %v471 = vpop.permute.xlu0 %470
    %472 = vrot.lane.b32.xlu0 %v453, 32
    %v473 = vpop.permute.xlu0 %472
    %v474 = vsel %vm327, %v471, 0
    %v476 = vsel %vm327, %v473, 0
    %478 = vmatprep.subr.mxu0 0.0
    %479 = vmatpush1.msra.mxu0 0.0
    %480 = vmatprep.subr.mxu0 0.0
    %481 = vmatpush1.msra.mxu0 0.0
    %482 = vmatprep.subr.mxu0 0.0
    %483 = vmatpush1.msra.mxu0 0.0
    %484 = vmatprep.subr.mxu0 0.0
    %485 = vmatpush1.msra.mxu0 0.0
    %486 = vmatprep.subr.mxu0 0.0
    %487 = vmatpush1.msra.mxu0 0.0
    %488 = vmatprep.subr.mxu0 0.0
    %489 = vmatpush1.msra.mxu0 0.0
    %490 = vmatprep.subr.mxu0 0.0
    %491 = vmatpush1.msra.mxu0 0.0
    %492 = vmatprep.subr.mxu0 0.0
    %493 = vmatpush1.msra.mxu0 0.0
    %494 = vmatprep.subr.mxu0 0.0
    %495 = vmatpush1.msra.mxu0 0.0
    %496 = vmatprep.subr.mxu0 0.0
    %497 = vmatpush1.msra.mxu0 0.0
    %498 = vmatprep.subr.mxu0 0.0
    %499 = vmatpush1.msra.mxu0 0.0
    %500 = vmatprep.subr.mxu0 0.0
    %501 = vmatpush1.msra.mxu0 0.0
    %502 = vmatprep.subr.mxu0 %v316
    %503 = vmatpush1.msra.mxu0 %v315
    %504 = vmatprep.subr.mxu0 %v314
    %505 = vmatpush1.msra.mxu0 %v313
    %506 = vmatprep.subr.mxu0 %v312
    %507 = vmatpush1.msra.mxu0 %v311
    %508 = vmatprep.subr.mxu0 %v310
    %509 = vmatpush1.msra.mxu0 %v309
    %510 = vmatprep.subr.mxu0 0.0
    %511 = vmatpush2.msra.mxu0 0.0
    %512 = vmatprep.subr.mxu0 0.0
    %513 = vmatpush2.msra.mxu0 0.0
    %514 = vmatprep.subr.mxu0 0.0
    %515 = vmatpush2.msra.mxu0 0.0
    %516 = vmatprep.subr.mxu0 0.0
    %517 = vmatpush2.msra.mxu0 0.0
    %518 = vmatprep.subr.mxu0 0.0
    %519 = vmatpush2.msra.mxu0 0.0
    %520 = vmatprep.subr.mxu0 0.0
    %521 = vmatpush2.msra.mxu0 0.0
    %522 = vmatprep.subr.mxu0 0.0
    %523 = vmatpush2.msra.mxu0 0.0
    %524 = vmatprep.subr.mxu0 0.0
    %525 = vmatpush2.msra.mxu0 0.0
    %526 = vmatprep.subr.mxu0 0.0
    %527 = vmatpush2.msra.mxu0 0.0
    %528 = vmatprep.subr.mxu0 0.0
    %529 = vmatpush2.msra.mxu0 0.0
    %530 = vmatprep.subr.mxu0 0.0
    %531 = vmatpush2.msra.mxu0 0.0
    %532 = vmatprep.subr.mxu0 0.0
    %533 = vmatpush2.msra.mxu0 0.0
    %534 = vmatprep.subr.mxu0 0.0
    %535 = vmatpush2.msra.mxu0 0.0
    %536 = vmatprep.subr.mxu0 0.0
    %537 = vmatpush2.msra.mxu0 0.0
    %538 = vmatprep.subr.mxu0 0.0
    %539 = vmatpush2.msra.mxu0 0.0
    %540 = vmatprep.subr.mxu0 0.0
    %541 = vmatpush2.msra.mxu0 0.0
    %542 = vmatprep.mubr.f32.mxu0 0.0
    %543 = vmatmul.mubr.f32.gmra.mxu0 %v474
    %v544 = vpop.f32.mrf.mxu0
    %v545 = vadd.f32 0.0, %v544
    %v546 = vpop.f32.mrf.mxu0
    %v547 = vadd.f32 0.0, %v546
    %548 = vmatprep.mubr.f32.mxu0 0.0
    %549 = vmatmul.mubr.f32.gmra.mxu0 %v476
    %v550 = vpop.f32.mrf.mxu0
    %v551 = vadd.f32 0.0, %v550
    %v552 = vpop.f32.mrf.mxu0
    %v553 = vadd.f32 0.0, %v552
    %554 = vdwg.mxu0
    %v555 = vsel %vm325, %v545, %v547
    %v556 = vsel %vm326, %v551, %v553
    %v557 = vadd.f32 %v293, %v555
    %v558 = vadd.f32 %v294, %v556
    %v559 = vtanh.pop %v557
    %v560 = vtanh.pop %v558
    %v561 = vmul.f32 %v559, 0.5
    %v562 = vmul.f32 %v560, 0.5
    %v563 = vadd.f32 %v561, 0.5
    %v564 = vadd.f32 %v562, 0.5
    %v565 = vsel %vm321, %v559, %v563
    %v566 = vsel %vm321, %v560, %v564
    %v567 = vmul.f32 %v565, %v440
    %v568 = vmul.f32 %v566, %v441
    %571 = vrot.lane.b32.xlu0 %v565, 64
    %v572 = vpop.permute.xlu0 %571
    %573 = vrot.lane.b32.xlu0 %v566, 64
    %v574 = vpop.permute.xlu0 %573
    %v577 = vmul.f32 %v565, %v572
    %v578 = vmul.f32 %v566, %v574
    %581 = vrot.lane.b32.xlu0 %v577, 32
    %v582 = vpop.permute.xlu0 %581
    %583 = vrot.lane.b32.xlu0 %v578, 32
    %v584 = vpop.permute.xlu0 %583
    %v587 = vadd.f32 %v567, %v582
    %v588 = vadd.f32 %v568, %v584
    %v589 = vtanh.pop %v587
    %v590 = vtanh.pop %v588
    %593 = vrot.lane.b32.xlu0 %v589, 64
    %v594 = vpop.permute.xlu0 %593
    %595 = vrot.lane.b32.xlu0 %v590, 64
    %v596 = vpop.permute.xlu0 %595
    %v599 = vmul.f32 %v565, %v594
    %v600 = vmul.f32 %v566, %v596
    %vm601 = vcmp.eq.s32.totalorder %v307, 2
    %vm602 = vcmp.eq.s32.totalorder %v308, 2
    %v603 = vsel %vm601, 1, 0
    %v604 = vsel %vm602, 1, 0
    %605 = vset.pattern.permute.xlu0 0
    %606 = vperm.xlu0 %605, %v603
    %v607 = vpop.permute.xlu0 %606
    %608 = vset.pattern.permute.xlu0 0
    %609 = vperm.xlu0 %608, %v604
    %v610 = vpop.permute.xlu0 %609
    %vm611 = vcmp.eq.s32.totalorder %v607, 1
    %vm612 = vcmp.eq.s32.totalorder %v610, 1
    %v613 = vsel %vm611, %v599, %v466
    %v614 = vsel %vm612, %v600, %v467
    %617 = vrot.lane.b32.xlu0 %v599, 32
    %v618 = vpop.permute.xlu0 %617
    %619 = vrot.lane.b32.xlu0 %v600, 32
    %v620 = vpop.permute.xlu0 %619
    %v621 = vsel %vm327, %v618, 0
    %v623 = vsel %vm327, %v620, 0
    %625 = vmatprep.subr.mxu0 0.0
    %626 = vmatpush1.msra.mxu0 0.0
    %627 = vmatprep.subr.mxu0 0.0
    %628 = vmatpush1.msra.mxu0 0.0
    %629 = vmatprep.subr.mxu0 0.0
    %630 = vmatpush1.msra.mxu0 0.0
    %631 = vmatprep.subr.mxu0 0.0
    %632 = vmatpush1.msra.mxu0 0.0
    %633 = vmatprep.subr.mxu0 0.0
    %634 = vmatpush1.msra.mxu0 0.0
    %635 = vmatprep.subr.mxu0 0.0
    %636 = vmatpush1.msra.mxu0 0.0
    %637 = vmatprep.subr.mxu0 0.0
    %638 = vmatpush1.msra.mxu0 0.0
    %639 = vmatprep.subr.mxu0 0.0
    %640 = vmatpush1.msra.mxu0 0.0
    %641 = vmatprep.subr.mxu0 0.0
    %642 = vmatpush1.msra.mxu0 0.0
    %643 = vmatprep.subr.mxu0 0.0
    %644 = vmatpush1.msra.mxu0 0.0
    %645 = vmatprep.subr.mxu0 0.0
    %646 = vmatpush1.msra.mxu0 0.0
    %647 = vmatprep.subr.mxu0 0.0
    %648 = vmatpush1.msra.mxu0 0.0
    %649 = vmatprep.subr.mxu0 %v316
    %650 = vmatpush1.msra.mxu0 %v315
    %651 = vmatprep.subr.mxu0 %v314
    %652 = vmatpush1.msra.mxu0 %v313
    %653 = vmatprep.subr.mxu0 %v312
    %654 = vmatpush1.msra.mxu0 %v311
    %655 = vmatprep.subr.mxu0 %v310
    %656 = vmatpush1.msra.mxu0 %v309
    %657 = vmatprep.subr.mxu0 0.0
    %658 = vmatpush2.msra.mxu0 0.0
    %659 = vmatprep.subr.mxu0 0.0
    %660 = vmatpush2.msra.mxu0 0.0
    %661 = vmatprep.subr.mxu0 0.0
    %662 = vmatpush2.msra.mxu0 0.0
    %663 = vmatprep.subr.mxu0 0.0
    %664 = vmatpush2.msra.mxu0 0.0
    %665 = vmatprep.subr.mxu0 0.0
    %666 = vmatpush2.msra.mxu0 0.0
    %667 = vmatprep.subr.mxu0 0.0
    %668 = vmatpush2.msra.mxu0 0.0
    %669 = vmatprep.subr.mxu0 0.0
    %670 = vmatpush2.msra.mxu0 0.0
    %671 = vmatprep.subr.mxu0 0.0
    %672 = vmatpush2.msra.mxu0 0.0
    %673 = vmatprep.subr.mxu0 0.0
    %674 = vmatpush2.msra.mxu0 0.0
    %675 = vmatprep.subr.mxu0 0.0
    %676 = vmatpush2.msra.mxu0 0.0
    %677 = vmatprep.subr.mxu0 0.0
    %678 = vmatpush2.msra.mxu0 0.0
    %679 = vmatprep.subr.mxu0 0.0
    %680 = vmatpush2.msra.mxu0 0.0
    %681 = vmatprep.subr.mxu0 0.0
    %682 = vmatpush2.msra.mxu0 0.0
    %683 = vmatprep.subr.mxu0 0.0
    %684 = vmatpush2.msra.mxu0 0.0
    %685 = vmatprep.subr.mxu0 0.0
    %686 = vmatpush2.msra.mxu0 0.0
    %687 = vmatprep.subr.mxu0 0.0
    %688 = vmatpush2.msra.mxu0 0.0
    %689 = vmatprep.mubr.f32.mxu0 0.0
    %690 = vmatmul.mubr.f32.gmra.mxu0 %v621
    %v691 = vpop.f32.mrf.mxu0
    %v692 = vadd.f32 0.0, %v691
    %v693 = vpop.f32.mrf.mxu0
    %v694 = vadd.f32 0.0, %v693
    %695 = vmatprep.mubr.f32.mxu0 0.0
    %696 = vmatmul.mubr.f32.gmra.mxu0 %v623
    %v697 = vpop.f32.mrf.mxu0
    %v698 = vadd.f32 0.0, %v697
    %v699 = vpop.f32.mrf.mxu0
    %v700 = vadd.f32 0.0, %v699
    %701 = vdwg.mxu0
    %v702 = vsel %vm325, %v692, %v694
    %v703 = vsel %vm326, %v698, %v700
    %v704 = vadd.f32 %v295, %v702
    %v705 = vadd.f32 %v296, %v703
    %v706 = vtanh.pop %v704
    %v707 = vtanh.pop %v705
    %v708 = vmul.f32 %v706, 0.5
    %v709 = vmul.f32 %v707, 0.5
    %v710 = vadd.f32 %v708, 0.5
    %v711 = vadd.f32 %v709, 0.5
    %v712 = vsel %vm321, %v706, %v710
    %v713 = vsel %vm321, %v707, %v711
    %v714 = vmul.f32 %v712, %v587
    %v715 = vmul.f32 %v713, %v588
    %718 = vrot.lane.b32.xlu0 %v712, 64
    %v719 = vpop.permute.xlu0 %718
    %720 = vrot.lane.b32.xlu0 %v713, 64
    %v721 = vpop.permute.xlu0 %720
    %v724 = vmul.f32 %v712, %v719
    %v725 = vmul.f32 %v713, %v721
    %728 = vrot.lane.b32.xlu0 %v724, 32
    %v729 = vpop.permute.xlu0 %728
    %730 = vrot.lane.b32.xlu0 %v725, 32
    %v731 = vpop.permute.xlu0 %730
    %v734 = vadd.f32 %v714, %v729
    %v735 = vadd.f32 %v715, %v731
    %v736 = vtanh.pop %v734
    %v737 = vtanh.pop %v735
    %740 = vrot.lane.b32.xlu0 %v736, 64
    %v741 = vpop.permute.xlu0 %740
    %742 = vrot.lane.b32.xlu0 %v737, 64
    %v743 = vpop.permute.xlu0 %742
    %v746 = vmul.f32 %v712, %v741
    %v747 = vmul.f32 %v713, %v743
    %vm748 = vcmp.eq.s32.totalorder %v307, 3
    %vm749 = vcmp.eq.s32.totalorder %v308, 3
    %v750 = vsel %vm748, 1, 0
    %v751 = vsel %vm749, 1, 0
    %752 = vset.pattern.permute.xlu0 0
    %753 = vperm.xlu0 %752, %v750
    %v754 = vpop.permute.xlu0 %753
    %755 = vset.pattern.permute.xlu0 0
    %756 = vperm.xlu0 %755, %v751
    %v757 = vpop.permute.xlu0 %756
    %vm758 = vcmp.eq.s32.totalorder %v754, 1
    %vm759 = vcmp.eq.s32.totalorder %v757, 1
    %v760 = vsel %vm758, %v746, %v613
    %v761 = vsel %vm759, %v747, %v614
    %764 = vrot.lane.b32.xlu0 %v746, 32
    %v765 = vpop.permute.xlu0 %764
    %766 = vrot.lane.b32.xlu0 %v747, 32
    %v767 = vpop.permute.xlu0 %766
    %v768 = vsel %vm327, %v765, 0
    %v770 = vsel %vm327, %v767, 0
    %772 = vmatprep.subr.mxu0 0.0
    %773 = vmatpush1.msra.mxu0 0.0
    %774 = vmatprep.subr.mxu0 0.0
    %775 = vmatpush1.msra.mxu0 0.0
    %776 = vmatprep.subr.mxu0 0.0
    %777 = vmatpush1.msra.mxu0 0.0
    %778 = vmatprep.subr.mxu0 0.0
    %779 = vmatpush1.msra.mxu0 0.0
    %780 = vmatprep.subr.mxu0 0.0
    %781 = vmatpush1.msra.mxu0 0.0
    %782 = vmatprep.subr.mxu0 0.0
    %783 = vmatpush1.msra.mxu0 0.0
    %784 = vmatprep.subr.mxu0 0.0
    %785 = vmatpush1.msra.mxu0 0.0
    %786 = vmatprep.subr.mxu0 0.0
    %787 = vmatpush1.msra.mxu0 0.0
    %788 = vmatprep.subr.mxu0 0.0
    %789 = vmatpush1.msra.mxu0 0.0
    %790 = vmatprep.subr.mxu0 0.0
    %791 = vmatpush1.msra.mxu0 0.0
    %792 = vmatprep.subr.mxu0 0.0
    %793 = vmatpush1.msra.mxu0 0.0
    %794 = vmatprep.subr.mxu0 0.0
    %795 = vmatpush1.msra.mxu0 0.0
    %796 = vmatprep.subr.mxu0 %v316
    %797 = vmatpush1.msra.mxu0 %v315
    %798 = vmatprep.subr.mxu0 %v314
    %799 = vmatpush1.msra.mxu0 %v313
    %800 = vmatprep.subr.mxu0 %v312
    %801 = vmatpush1.msra.mxu0 %v311
    %802 = vmatprep.subr.mxu0 %v310
    %803 = vmatpush1.msra.mxu0 %v309
    %804 = vmatprep.subr.mxu0 0.0
    %805 = vmatpush2.msra.mxu0 0.0
    %806 = vmatprep.subr.mxu0 0.0
    %807 = vmatpush2.msra.mxu0 0.0
    %808 = vmatprep.subr.mxu0 0.0
    %809 = vmatpush2.msra.mxu0 0.0
    %810 = vmatprep.subr.mxu0 0.0
    %811 = vmatpush2.msra.mxu0 0.0
    %812 = vmatprep.subr.mxu0 0.0
    %813 = vmatpush2.msra.mxu0 0.0
    %814 = vmatprep.subr.mxu0 0.0
    %815 = vmatpush2.msra.mxu0 0.0
    %816 = vmatprep.subr.mxu0 0.0
    %817 = vmatpush2.msra.mxu0 0.0
    %818 = vmatprep.subr.mxu0 0.0
    %819 = vmatpush2.msra.mxu0 0.0
    %820 = vmatprep.subr.mxu0 0.0
    %821 = vmatpush2.msra.mxu0 0.0
    %822 = vmatprep.subr.mxu0 0.0
    %823 = vmatpush2.msra.mxu0 0.0
    %824 = vmatprep.subr.mxu0 0.0
    %825 = vmatpush2.msra.mxu0 0.0
    %826 = vmatprep.subr.mxu0 0.0
    %827 = vmatpush2.msra.mxu0 0.0
    %828 = vmatprep.subr.mxu0 0.0
    %829 = vmatpush2.msra.mxu0 0.0
    %830 = vmatprep.subr.mxu0 0.0
    %831 = vmatpush2.msra.mxu0 0.0
    %832 = vmatprep.subr.mxu0 0.0
    %833 = vmatpush2.msra.mxu0 0.0
    %834 = vmatprep.subr.mxu0 0.0
    %835 = vmatpush2.msra.mxu0 0.0
    %836 = vmatprep.mubr.f32.mxu0 0.0
    %837 = vmatmul.mubr.f32.gmra.mxu0 %v768
    %v838 = vpop.f32.mrf.mxu0
    %v839 = vadd.f32 0.0, %v838
    %v840 = vpop.f32.mrf.mxu0
    %v841 = vadd.f32 0.0, %v840
    %842 = vmatprep.mubr.f32.mxu0 0.0
    %843 = vmatmul.mubr.f32.gmra.mxu0 %v770
    %v844 = vpop.f32.mrf.mxu0
    %v845 = vadd.f32 0.0, %v844
    %v846 = vpop.f32.mrf.mxu0
    %v847 = vadd.f32 0.0, %v846
    %848 = vdwg.mxu0
    %v849 = vsel %vm325, %v839, %v841
    %v850 = vsel %vm326, %v845, %v847
    %v851 = vadd.f32 %v297, %v849
    %v852 = vadd.f32 %v298, %v850
    %v853 = vtanh.pop %v851
    %v854 = vtanh.pop %v852
    %v855 = vmul.f32 %v853, 0.5
    %v856 = vmul.f32 %v854, 0.5
    %v857 = vadd.f32 %v855, 0.5
    %v858 = vadd.f32 %v856, 0.5
    %v859 = vsel %vm321, %v853, %v857
    %v860 = vsel %vm321, %v854, %v858
    %v861 = vmul.f32 %v859, %v734
    %v862 = vmul.f32 %v860, %v735
    %865 = vrot.lane.b32.xlu0 %v859, 64
    %v866 = vpop.permute.xlu0 %865
    %867 = vrot.lane.b32.xlu0 %v860, 64
    %v868 = vpop.permute.xlu0 %867
    %v871 = vmul.f32 %v859, %v866
    %v872 = vmul.f32 %v860, %v868
    %875 = vrot.lane.b32.xlu0 %v871, 32
    %v876 = vpop.permute.xlu0 %875
    %877 = vrot.lane.b32.xlu0 %v872, 32
    %v878 = vpop.permute.xlu0 %877
    %v881 = vadd.f32 %v861, %v876
    %v882 = vadd.f32 %v862, %v878
    %v883 = vtanh.pop %v881
    %v884 = vtanh.pop %v882
    %887 = vrot.lane.b32.xlu0 %v883, 64
    %v888 = vpop.permute.xlu0 %887
    %889 = vrot.lane.b32.xlu0 %v884, 64
    %v890 = vpop.permute.xlu0 %889
    %v893 = vmul.f32 %v859, %v888
    %v894 = vmul.f32 %v860, %v890
    %vm895 = vcmp.eq.s32.totalorder %v307, 4
    %vm896 = vcmp.eq.s32.totalorder %v308, 4
    %v897 = vsel %vm895, 1, 0
    %v898 = vsel %vm896, 1, 0
    %899 = vset.pattern.permute.xlu0 0
    %900 = vperm.xlu0 %899, %v897
    %v901 = vpop.permute.xlu0 %900
    %902 = vset.pattern.permute.xlu0 0
    %903 = vperm.xlu0 %902, %v898
    %v904 = vpop.permute.xlu0 %903
    %vm905 = vcmp.eq.s32.totalorder %v901, 1
    %vm906 = vcmp.eq.s32.totalorder %v904, 1
    %v907 = vsel %vm905, %v893, %v760
    %v908 = vsel %vm906, %v894, %v761
    %911 = vrot.lane.b32.xlu0 %v893, 32
    %v912 = vpop.permute.xlu0 %911
    %913 = vrot.lane.b32.xlu0 %v894, 32
    %v914 = vpop.permute.xlu0 %913
    %v915 = vsel %vm327, %v912, 0
    %v917 = vsel %vm327, %v914, 0
    %919 = vmatprep.subr.mxu0 0.0
    %920 = vmatpush1.msra.mxu0 0.0
    %921 = vmatprep.subr.mxu0 0.0
    %922 = vmatpush1.msra.mxu0 0.0
    %923 = vmatprep.subr.mxu0 0.0
    %924 = vmatpush1.msra.mxu0 0.0
    %925 = vmatprep.subr.mxu0 0.0
    %926 = vmatpush1.msra.mxu0 0.0
    %927 = vmatprep.subr.mxu0 0.0
    %928 = vmatpush1.msra.mxu0 0.0
    %929 = vmatprep.subr.mxu0 0.0
    %930 = vmatpush1.msra.mxu0 0.0
    %931 = vmatprep.subr.mxu0 0.0
    %932 = vmatpush1.msra.mxu0 0.0
    %933 = vmatprep.subr.mxu0 0.0
    %934 = vmatpush1.msra.mxu0 0.0
    %935 = vmatprep.subr.mxu0 0.0
    %936 = vmatpush1.msra.mxu0 0.0
    %937 = vmatprep.subr.mxu0 0.0
    %938 = vmatpush1.msra.mxu0 0.0
    %939 = vmatprep.subr.mxu0 0.0
    %940 = vmatpush1.msra.mxu0 0.0
    %941 = vmatprep.subr.mxu0 0.0
    %942 = vmatpush1.msra.mxu0 0.0
    %943 = vmatprep.subr.mxu0 %v316
    %944 = vmatpush1.msra.mxu0 %v315
    %945 = vmatprep.subr.mxu0 %v314
    %946 = vmatpush1.msra.mxu0 %v313
    %947 = vmatprep.subr.mxu0 %v312
    %948 = vmatpush1.msra.mxu0 %v311
    %949 = vmatprep.subr.mxu0 %v310
    %950 = vmatpush1.msra.mxu0 %v309
    %951 = vmatprep.subr.mxu0 0.0
    %952 = vmatpush2.msra.mxu0 0.0
    %953 = vmatprep.subr.mxu0 0.0
    %954 = vmatpush2.msra.mxu0 0.0
    %955 = vmatprep.subr.mxu0 0.0
    %956 = vmatpush2.msra.mxu0 0.0
    %957 = vmatprep.subr.mxu0 0.0
    %958 = vmatpush2.msra.mxu0 0.0
    %959 = vmatprep.subr.mxu0 0.0
    %960 = vmatpush2.msra.mxu0 0.0
    %961 = vmatprep.subr.mxu0 0.0
    %962 = vmatpush2.msra.mxu0 0.0
    %963 = vmatprep.subr.mxu0 0.0
    %964 = vmatpush2.msra.mxu0 0.0
    %965 = vmatprep.subr.mxu0 0.0
    %966 = vmatpush2.msra.mxu0 0.0
    %967 = vmatprep.subr.mxu0 0.0
    %968 = vmatpush2.msra.mxu0 0.0
    %969 = vmatprep.subr.mxu0 0.0
    %970 = vmatpush2.msra.mxu0 0.0
    %971 = vmatprep.subr.mxu0 0.0
    %972 = vmatpush2.msra.mxu0 0.0
    %973 = vmatprep.subr.mxu0 0.0
    %974 = vmatpush2.msra.mxu0 0.0
    %975 = vmatprep.subr.mxu0 0.0
    %976 = vmatpush2.msra.mxu0 0.0
    %977 = vmatprep.subr.mxu0 0.0
    %978 = vmatpush2.msra.mxu0 0.0
    %979 = vmatprep.subr.mxu0 0.0
    %980 = vmatpush2.msra.mxu0 0.0
    %981 = vmatprep.subr.mxu0 0.0
    %982 = vmatpush2.msra.mxu0 0.0
    %983 = vmatprep.mubr.f32.mxu0 0.0
    %984 = vmatmul.mubr.f32.gmra.mxu0 %v915
    %v985 = vpop.f32.mrf.mxu0
    %v986 = vadd.f32 0.0, %v985
    %v987 = vpop.f32.mrf.mxu0
    %v988 = vadd.f32 0.0, %v987
    %989 = vmatprep.mubr.f32.mxu0 0.0
    %990 = vmatmul.mubr.f32.gmra.mxu0 %v917
    %v991 = vpop.f32.mrf.mxu0
    %v992 = vadd.f32 0.0, %v991
    %v993 = vpop.f32.mrf.mxu0
    %v994 = vadd.f32 0.0, %v993
    %995 = vdwg.mxu0
    %v996 = vsel %vm325, %v986, %v988
    %v997 = vsel %vm326, %v992, %v994
    %v998 = vadd.f32 %v299, %v996
    %v999 = vadd.f32 %v300, %v997
    %v1000 = vtanh.pop %v998
    %v1001 = vtanh.pop %v999
    %v1002 = vmul.f32 %v1000, 0.5
    %v1003 = vmul.f32 %v1001, 0.5
    %v1004 = vadd.f32 %v1002, 0.5
    %v1005 = vadd.f32 %v1003, 0.5
    %v1006 = vsel %vm321, %v1000, %v1004
    %v1007 = vsel %vm321, %v1001, %v1005
    %v1008 = vmul.f32 %v1006, %v881
    %v1009 = vmul.f32 %v1007, %v882
    %1012 = vrot.lane.b32.xlu0 %v1006, 64
    %v1013 = vpop.permute.xlu0 %1012
    %1014 = vrot.lane.b32.xlu0 %v1007, 64
    %v1015 = vpop.permute.xlu0 %1014
    %v1018 = vmul.f32 %v1006, %v1013
    %v1019 = vmul.f32 %v1007, %v1015
    %1022 = vrot.lane.b32.xlu0 %v1018, 32
    %v1023 = vpop.permute.xlu0 %1022
    %1024 = vrot.lane.b32.xlu0 %v1019, 32
    %v1025 = vpop.permute.xlu0 %1024
    %v1028 = vadd.f32 %v1008, %v1023
    %v1029 = vadd.f32 %v1009, %v1025
    %v1030 = vtanh.pop %v1028
    %v1031 = vtanh.pop %v1029
    %1034 = vrot.lane.b32.xlu0 %v1030, 64
    %v1035 = vpop.permute.xlu0 %1034
    %1036 = vrot.lane.b32.xlu0 %v1031, 64
    %v1037 = vpop.permute.xlu0 %1036
    %v1040 = vmul.f32 %v1006, %v1035
    %v1041 = vmul.f32 %v1007, %v1037
    %vm1042 = vcmp.eq.s32.totalorder %v307, 5
    %vm1043 = vcmp.eq.s32.totalorder %v308, 5
    %v1044 = vsel %vm1042, 1, 0
    %v1045 = vsel %vm1043, 1, 0
    %1046 = vset.pattern.permute.xlu0 0
    %1047 = vperm.xlu0 %1046, %v1044
    %v1048 = vpop.permute.xlu0 %1047
    %1049 = vset.pattern.permute.xlu0 0
    %1050 = vperm.xlu0 %1049, %v1045
    %v1051 = vpop.permute.xlu0 %1050
    %vm1052 = vcmp.eq.s32.totalorder %v1048, 1
    %vm1053 = vcmp.eq.s32.totalorder %v1051, 1
    %v1054 = vsel %vm1052, %v1040, %v907
    %v1055 = vsel %vm1053, %v1041, %v908
    %1058 = vrot.lane.b32.xlu0 %v1040, 32
    %v1059 = vpop.permute.xlu0 %1058
    %1060 = vrot.lane.b32.xlu0 %v1041, 32
    %v1061 = vpop.permute.xlu0 %1060
    %v1062 = vsel %vm327, %v1059, 0
    %v1064 = vsel %vm327, %v1061, 0
    %1066 = vmatprep.subr.mxu0 0.0
    %1067 = vmatpush1.msra.mxu0 0.0
    %1068 = vmatprep.subr.mxu0 0.0
    %1069 = vmatpush1.msra.mxu0 0.0
    %1070 = vmatprep.subr.mxu0 0.0
    %1071 = vmatpush1.msra.mxu0 0.0
    %1072 = vmatprep.subr.mxu0 0.0
    %1073 = vmatpush1.msra.mxu0 0.0
    %1074 = vmatprep.subr.mxu0 0.0
    %1075 = vmatpush1.msra.mxu0 0.0
    %1076 = vmatprep.subr.mxu0 0.0
    %1077 = vmatpush1.msra.mxu0 0.0
    %1078 = vmatprep.subr.mxu0 0.0
    %1079 = vmatpush1.msra.mxu0 0.0
    %1080 = vmatprep.subr.mxu0 0.0
    %1081 = vmatpush1.msra.mxu0 0.0
    %1082 = vmatprep.subr.mxu0 0.0
    %1083 = vmatpush1.msra.mxu0 0.0
    %1084 = vmatprep.subr.mxu0 0.0
    %1085 = vmatpush1.msra.mxu0 0.0
    %1086 = vmatprep.subr.mxu0 0.0
    %1087 = vmatpush1.msra.mxu0 0.0
    %1088 = vmatprep.subr.mxu0 0.0
    %1089 = vmatpush1.msra.mxu0 0.0
    %1090 = vmatprep.subr.mxu0 %v316
    %1091 = vmatpush1.msra.mxu0 %v315
    %1092 = vmatprep.subr.mxu0 %v314
    %1093 = vmatpush1.msra.mxu0 %v313
    %1094 = vmatprep.subr.mxu0 %v312
    %1095 = vmatpush1.msra.mxu0 %v311
    %1096 = vmatprep.subr.mxu0 %v310
    %1097 = vmatpush1.msra.mxu0 %v309
    %1098 = vmatprep.subr.mxu0 0.0
    %1099 = vmatpush2.msra.mxu0 0.0
    %1100 = vmatprep.subr.mxu0 0.0
    %1101 = vmatpush2.msra.mxu0 0.0
    %1102 = vmatprep.subr.mxu0 0.0
    %1103 = vmatpush2.msra.mxu0 0.0
    %1104 = vmatprep.subr.mxu0 0.0
    %1105 = vmatpush2.msra.mxu0 0.0
    %1106 = vmatprep.subr.mxu0 0.0
    %1107 = vmatpush2.msra.mxu0 0.0
    %1108 = vmatprep.subr.mxu0 0.0
    %1109 = vmatpush2.msra.mxu0 0.0
    %1110 = vmatprep.subr.mxu0 0.0
    %1111 = vmatpush2.msra.mxu0 0.0
    %1112 = vmatprep.subr.mxu0 0.0
    %1113 = vmatpush2.msra.mxu0 0.0
    %1114 = vmatprep.subr.mxu0 0.0
    %1115 = vmatpush2.msra.mxu0 0.0
    %1116 = vmatprep.subr.mxu0 0.0
    %1117 = vmatpush2.msra.mxu0 0.0
    %1118 = vmatprep.subr.mxu0 0.0
    %1119 = vmatpush2.msra.mxu0 0.0
    %1120 = vmatprep.subr.mxu0 0.0
    %1121 = vmatpush2.msra.mxu0 0.0
    %1122 = vmatprep.subr.mxu0 0.0
    %1123 = vmatpush2.msra.mxu0 0.0
    %1124 = vmatprep.subr.mxu0 0.0
    %1125 = vmatpush2.msra.mxu0 0.0
    %1126 = vmatprep.subr.mxu0 0.0
    %1127 = vmatpush2.msra.mxu0 0.0
    %1128 = vmatprep.subr.mxu0 0.0
    %1129 = vmatpush2.msra.mxu0 0.0
    %1130 = vmatprep.mubr.f32.mxu0 0.0
    %1131 = vmatmul.mubr.f32.gmra.mxu0 %v1062
    %v1132 = vpop.f32.mrf.mxu0
    %v1133 = vadd.f32 0.0, %v1132
    %v1134 = vpop.f32.mrf.mxu0
    %v1135 = vadd.f32 0.0, %v1134
    %1136 = vmatprep.mubr.f32.mxu0 0.0
    %1137 = vmatmul.mubr.f32.gmra.mxu0 %v1064
    %v1138 = vpop.f32.mrf.mxu0
    %v1139 = vadd.f32 0.0, %v1138
    %v1140 = vpop.f32.mrf.mxu0
    %v1141 = vadd.f32 0.0, %v1140
    %1142 = vdwg.mxu0
    %v1143 = vsel %vm325, %v1133, %v1135
    %v1144 = vsel %vm326, %v1139, %v1141
    %v1145 = vadd.f32 %v301, %v1143
    %v1146 = vadd.f32 %v302, %v1144
    %v1147 = vtanh.pop %v1145
    %v1148 = vtanh.pop %v1146
    %v1149 = vmul.f32 %v1147, 0.5
    %v1150 = vmul.f32 %v1148, 0.5
    %v1151 = vadd.f32 %v1149, 0.5
    %v1152 = vadd.f32 %v1150, 0.5
    %v1153 = vsel %vm321, %v1147, %v1151
    %v1154 = vsel %vm321, %v1148, %v1152
    %v1155 = vmul.f32 %v1153, %v1028
    %v1156 = vmul.f32 %v1154, %v1029
    %1159 = vrot.lane.b32.xlu0 %v1153, 64
    %v1160 = vpop.permute.xlu0 %1159
    %1161 = vrot.lane.b32.xlu0 %v1154, 64
    %v1162 = vpop.permute.xlu0 %1161
    %v1165 = vmul.f32 %v1153, %v1160
    %v1166 = vmul.f32 %v1154, %v1162
    %1169 = vrot.lane.b32.xlu0 %v1165, 32
    %v1170 = vpop.permute.xlu0 %1169
    %1171 = vrot.lane.b32.xlu0 %v1166, 32
    %v1172 = vpop.permute.xlu0 %1171
    %v1175 = vadd.f32 %v1155, %v1170
    %v1176 = vadd.f32 %v1156, %v1172
    %v1177 = vtanh.pop %v1175
    %v1178 = vtanh.pop %v1176
    %1181 = vrot.lane.b32.xlu0 %v1177, 64
    %v1182 = vpop.permute.xlu0 %1181
    %1183 = vrot.lane.b32.xlu0 %v1178, 64
    %v1184 = vpop.permute.xlu0 %1183
    %v1187 = vmul.f32 %v1153, %v1182
    %v1188 = vmul.f32 %v1154, %v1184
    %vm1189 = vcmp.eq.s32.totalorder %v307, 6
    %vm1190 = vcmp.eq.s32.totalorder %v308, 6
    %v1191 = vsel %vm1189, 1, 0
    %v1192 = vsel %vm1190, 1, 0
    %1193 = vset.pattern.permute.xlu0 0
    %1194 = vperm.xlu0 %1193, %v1191
    %v1195 = vpop.permute.xlu0 %1194
    %1196 = vset.pattern.permute.xlu0 0
    %1197 = vperm.xlu0 %1196, %v1192
    %v1198 = vpop.permute.xlu0 %1197
    %vm1199 = vcmp.eq.s32.totalorder %v1195, 1
    %vm1200 = vcmp.eq.s32.totalorder %v1198, 1
    %v1201 = vsel %vm1199, %v1187, %v1054
    %v1202 = vsel %vm1200, %v1188, %v1055
    %1205 = vrot.lane.b32.xlu0 %v1187, 32
    %v1206 = vpop.permute.xlu0 %1205
    %1207 = vrot.lane.b32.xlu0 %v1188, 32
    %v1208 = vpop.permute.xlu0 %1207
    %v1209 = vsel %vm327, %v1206, 0
    %v1211 = vsel %vm327, %v1208, 0
    %1213 = vmatprep.subr.mxu0 0.0
    %1214 = vmatpush1.msra.mxu0 0.0
    %1215 = vmatprep.subr.mxu0 0.0
    %1216 = vmatpush1.msra.mxu0 0.0
    %1217 = vmatprep.subr.mxu0 0.0
    %1218 = vmatpush1.msra.mxu0 0.0
    %1219 = vmatprep.subr.mxu0 0.0
    %1220 = vmatpush1.msra.mxu0 0.0
    %1221 = vmatprep.subr.mxu0 0.0
    %1222 = vmatpush1.msra.mxu0 0.0
    %1223 = vmatprep.subr.mxu0 0.0
    %1224 = vmatpush1.msra.mxu0 0.0
    %1225 = vmatprep.subr.mxu0 0.0
    %1226 = vmatpush1.msra.mxu0 0.0
    %1227 = vmatprep.subr.mxu0 0.0
    %1228 = vmatpush1.msra.mxu0 0.0
    %1229 = vmatprep.subr.mxu0 0.0
    %1230 = vmatpush1.msra.mxu0 0.0
    %1231 = vmatprep.subr.mxu0 0.0
    %1232 = vmatpush1.msra.mxu0 0.0
    %1233 = vmatprep.subr.mxu0 0.0
    %1234 = vmatpush1.msra.mxu0 0.0
    %1235 = vmatprep.subr.mxu0 0.0
    %1236 = vmatpush1.msra.mxu0 0.0
    %1237 = vmatprep.subr.mxu0 %v316
    %1238 = vmatpush1.msra.mxu0 %v315
    %1239 = vmatprep.subr.mxu0 %v314
    %1240 = vmatpush1.msra.mxu0 %v313
    %1241 = vmatprep.subr.mxu0 %v312
    %1242 = vmatpush1.msra.mxu0 %v311
    %1243 = vmatprep.subr.mxu0 %v310
    %1244 = vmatpush1.msra.mxu0 %v309
    %1245 = vmatprep.subr.mxu0 0.0
    %1246 = vmatpush2.msra.mxu0 0.0
    %1247 = vmatprep.subr.mxu0 0.0
    %1248 = vmatpush2.msra.mxu0 0.0
    %1249 = vmatprep.subr.mxu0 0.0
    %1250 = vmatpush2.msra.mxu0 0.0
    %1251 = vmatprep.subr.mxu0 0.0
    %1252 = vmatpush2.msra.mxu0 0.0
    %1253 = vmatprep.subr.mxu0 0.0
    %1254 = vmatpush2.msra.mxu0 0.0
    %1255 = vmatprep.subr.mxu0 0.0
    %1256 = vmatpush2.msra.mxu0 0.0
    %1257 = vmatprep.subr.mxu0 0.0
    %1258 = vmatpush2.msra.mxu0 0.0
    %1259 = vmatprep.subr.mxu0 0.0
    %1260 = vmatpush2.msra.mxu0 0.0
    %1261 = vmatprep.subr.mxu0 0.0
    %1262 = vmatpush2.msra.mxu0 0.0
    %1263 = vmatprep.subr.mxu0 0.0
    %1264 = vmatpush2.msra.mxu0 0.0
    %1265 = vmatprep.subr.mxu0 0.0
    %1266 = vmatpush2.msra.mxu0 0.0
    %1267 = vmatprep.subr.mxu0 0.0
    %1268 = vmatpush2.msra.mxu0 0.0
    %1269 = vmatprep.subr.mxu0 0.0
    %1270 = vmatpush2.msra.mxu0 0.0
    %1271 = vmatprep.subr.mxu0 0.0
    %1272 = vmatpush2.msra.mxu0 0.0
    %1273 = vmatprep.subr.mxu0 0.0
    %1274 = vmatpush2.msra.mxu0 0.0
    %1275 = vmatprep.subr.mxu0 0.0
    %1276 = vmatpush2.msra.mxu0 0.0
    %1277 = vmatprep.mubr.f32.mxu0 0.0
    %1278 = vmatmul.mubr.f32.gmra.mxu0 %v1209
    %v1279 = vpop.f32.mrf.mxu0
    %v1280 = vadd.f32 0.0, %v1279
    %v1281 = vpop.f32.mrf.mxu0
    %v1282 = vadd.f32 0.0, %v1281
    %1283 = vmatprep.mubr.f32.mxu0 0.0
    %1284 = vmatmul.mubr.f32.gmra.mxu0 %v1211
    %v1285 = vpop.f32.mrf.mxu0
    %v1286 = vadd.f32 0.0, %v1285
    %v1287 = vpop.f32.mrf.mxu0
    %v1288 = vadd.f32 0.0, %v1287
    %1289 = vdwg.mxu0
    %v1290 = vsel %vm325, %v1280, %v1282
    %v1291 = vsel %vm326, %v1286, %v1288
    %v1292 = vadd.f32 %v303, %v1290
    %v1293 = vadd.f32 %v304, %v1291
    %v1294 = vtanh.pop %v1292
    %v1295 = vtanh.pop %v1293
    %v1296 = vmul.f32 %v1294, 0.5
    %v1297 = vmul.f32 %v1295, 0.5
    %v1298 = vadd.f32 %v1296, 0.5
    %v1299 = vadd.f32 %v1297, 0.5
    %v1300 = vsel %vm321, %v1294, %v1298
    %v1301 = vsel %vm321, %v1295, %v1299
    %v1302 = vmul.f32 %v1300, %v1175
    %v1303 = vmul.f32 %v1301, %v1176
    %1306 = vrot.lane.b32.xlu0 %v1300, 64
    %v1307 = vpop.permute.xlu0 %1306
    %1308 = vrot.lane.b32.xlu0 %v1301, 64
    %v1309 = vpop.permute.xlu0 %1308
    %v1312 = vmul.f32 %v1300, %v1307
    %v1313 = vmul.f32 %v1301, %v1309
    %1316 = vrot.lane.b32.xlu0 %v1312, 32
    %v1317 = vpop.permute.xlu0 %1316
    %1318 = vrot.lane.b32.xlu0 %v1313, 32
    %v1319 = vpop.permute.xlu0 %1318
    %v1322 = vadd.f32 %v1302, %v1317
    %v1323 = vadd.f32 %v1303, %v1319
    %v1324 = vtanh.pop %v1322
    %v1325 = vtanh.pop %v1323
    %1328 = vrot.lane.b32.xlu0 %v1324, 64
    %v1329 = vpop.permute.xlu0 %1328
    %1330 = vrot.lane.b32.xlu0 %v1325, 64
    %v1331 = vpop.permute.xlu0 %1330
    %v1334 = vmul.f32 %v1300, %v1329
    %v1335 = vmul.f32 %v1301, %v1331
    %vm1336 = vcmp.eq.s32.totalorder %v307, 7
    %vm1337 = vcmp.eq.s32.totalorder %v308, 7
    %v1338 = vsel %vm1336, 1, 0
    %v1339 = vsel %vm1337, 1, 0
    %1340 = vset.pattern.permute.xlu0 0
    %1341 = vperm.xlu0 %1340, %v1338
    %v1342 = vpop.permute.xlu0 %1341
    %1343 = vset.pattern.permute.xlu0 0
    %1344 = vperm.xlu0 %1343, %v1339
    %v1345 = vpop.permute.xlu0 %1344
    %vm1346 = vcmp.eq.s32.totalorder %v1342, 1
    %vm1347 = vcmp.eq.s32.totalorder %v1345, 1
    %v1348 = vsel %vm1346, %v1334, %v1201
    %v1349 = vsel %vm1347, %v1335, %v1202
    %1352 = vrot.lane.b32.xlu0 %v1334, 32
    %v1353 = vpop.permute.xlu0 %1352
    %1354 = vrot.lane.b32.xlu0 %v1335, 32
    %v1355 = vpop.permute.xlu0 %1354
    %v1356 = vsel %vm327, %v1353, 0
    %v1358 = vsel %vm327, %v1355, 0
    %1360 = vmatprep.subr.mxu0 0.0
    %1361 = vmatpush1.msra.mxu0 0.0
    %1362 = vmatprep.subr.mxu0 0.0
    %1363 = vmatpush1.msra.mxu0 0.0
    %1364 = vmatprep.subr.mxu0 0.0
    %1365 = vmatpush1.msra.mxu0 0.0
    %1366 = vmatprep.subr.mxu0 0.0
    %1367 = vmatpush1.msra.mxu0 0.0
    %1368 = vmatprep.subr.mxu0 0.0
    %1369 = vmatpush1.msra.mxu0 0.0
    %1370 = vmatprep.subr.mxu0 0.0
    %1371 = vmatpush1.msra.mxu0 0.0
    %1372 = vmatprep.subr.mxu0 0.0
    %1373 = vmatpush1.msra.mxu0 0.0
    %1374 = vmatprep.subr.mxu0 0.0
    %1375 = vmatpush1.msra.mxu0 0.0
    %1376 = vmatprep.subr.mxu0 0.0
    %1377 = vmatpush1.msra.mxu0 0.0
    %1378 = vmatprep.subr.mxu0 0.0
    %1379 = vmatpush1.msra.mxu0 0.0
    %1380 = vmatprep.subr.mxu0 0.0
    %1381 = vmatpush1.msra.mxu0 0.0
    %1382 = vmatprep.subr.mxu0 0.0
    %1383 = vmatpush1.msra.mxu0 0.0
    %1384 = vmatprep.subr.mxu0 %v316
    %1385 = vmatpush1.msra.mxu0 %v315
    %1386 = vmatprep.subr.mxu0 %v314
    %1387 = vmatpush1.msra.mxu0 %v313
    %1388 = vmatprep.subr.mxu0 %v312
    %1389 = vmatpush1.msra.mxu0 %v311
    %1390 = vmatprep.subr.mxu0 %v310
    %1391 = vmatpush1.msra.mxu0 %v309
    %1392 = vmatprep.subr.mxu0 0.0
    %1393 = vmatpush2.msra.mxu0 0.0
    %1394 = vmatprep.subr.mxu0 0.0
    %1395 = vmatpush2.msra.mxu0 0.0
    %1396 = vmatprep.subr.mxu0 0.0
    %1397 = vmatpush2.msra.mxu0 0.0
    %1398 = vmatprep.subr.mxu0 0.0
    %1399 = vmatpush2.msra.mxu0 0.0
    %1400 = vmatprep.subr.mxu0 0.0
    %1401 = vmatpush2.msra.mxu0 0.0
    %1402 = vmatprep.subr.mxu0 0.0
    %1403 = vmatpush2.msra.mxu0 0.0
    %1404 = vmatprep.subr.mxu0 0.0
    %1405 = vmatpush2.msra.mxu0 0.0
    %1406 = vmatprep.subr.mxu0 0.0
    %1407 = vmatpush2.msra.mxu0 0.0
    %1408 = vmatprep.subr.mxu0 0.0
    %1409 = vmatpush2.msra.mxu0 0.0
    %1410 = vmatprep.subr.mxu0 0.0
    %1411 = vmatpush2.msra.mxu0 0.0
    %1412 = vmatprep.subr.mxu0 0.0
    %1413 = vmatpush2.msra.mxu0 0.0
    %1414 = vmatprep.subr.mxu0 0.0
    %1415 = vmatpush2.msra.mxu0 0.0
    %1416 = vmatprep.subr.mxu0 0.0
    %1417 = vmatpush2.msra.mxu0 0.0
    %1418 = vmatprep.subr.mxu0 0.0
    %1419 = vmatpush2.msra.mxu0 0.0
    %1420 = vmatprep.subr.mxu0 0.0
    %1421 = vmatpush2.msra.mxu0 0.0
    %1422 = vmatprep.subr.mxu0 0.0
    %1423 = vmatpush2.msra.mxu0 0.0
    %1424 = vmatprep.mubr.f32.mxu0 0.0
    %1425 = vmatmul.mubr.f32.gmra.mxu0 %v1356
    %v1426 = vpop.f32.mrf.mxu0
    %v1427 = vadd.f32 0.0, %v1426
    %v1428 = vpop.f32.mrf.mxu0
    %v1429 = vadd.f32 0.0, %v1428
    %1430 = vmatprep.mubr.f32.mxu0 0.0
    %1431 = vmatmul.mubr.f32.gmra.mxu0 %v1358
    %v1432 = vpop.f32.mrf.mxu0
    %v1433 = vadd.f32 0.0, %v1432
    %v1434 = vpop.f32.mrf.mxu0
    %v1435 = vadd.f32 0.0, %v1434
    %1436 = vdwg.mxu0
    %v1437 = vsel %vm325, %v1427, %v1429
    %v1438 = vsel %vm326, %v1433, %v1435
    %v1439 = vadd.f32 %v305, %v1437
    %v1440 = vadd.f32 %v306, %v1438
    %v1441 = vtanh.pop %v1439
    %v1442 = vtanh.pop %v1440
    %v1443 = vmul.f32 %v1441, 0.5
    %v1444 = vmul.f32 %v1442, 0.5
    %v1445 = vadd.f32 %v1443, 0.5
    %v1446 = vadd.f32 %v1444, 0.5
    %v1447 = vsel %vm321, %v1441, %v1445
    %v1448 = vsel %vm321, %v1442, %v1446
    %v1449 = vmul.f32 %v1447, %v1322
    %v1450 = vmul.f32 %v1448, %v1323
    %1453 = vrot.lane.b32.xlu0 %v1447, 64
    %v1454 = vpop.permute.xlu0 %1453
    %1455 = vrot.lane.b32.xlu0 %v1448, 64
    %v1456 = vpop.permute.xlu0 %1455
    %v1459 = vmul.f32 %v1447, %v1454
    %v1460 = vmul.f32 %v1448, %v1456
    %1463 = vrot.lane.b32.xlu0 %v1459, 32
    %v1464 = vpop.permute.xlu0 %1463
    %1465 = vrot.lane.b32.xlu0 %v1460, 32
    %v1466 = vpop.permute.xlu0 %1465
    %v1469 = vadd.f32 %v1449, %v1464
    %v1470 = vadd.f32 %v1450, %v1466
    %v1471 = vtanh.pop %v1469
    %v1472 = vtanh.pop %v1470
    %1475 = vrot.lane.b32.xlu0 %v1471, 64
    %v1476 = vpop.permute.xlu0 %1475
    %1477 = vrot.lane.b32.xlu0 %v1472, 64
    %v1478 = vpop.permute.xlu0 %1477
    %v1481 = vmul.f32 %v1447, %v1476
    %v1482 = vmul.f32 %v1448, %v1478
    %vm1483 = vcmp.eq.s32.totalorder %v307, 8
    %vm1484 = vcmp.eq.s32.totalorder %v308, 8
    %v1485 = vsel %vm1483, 1, 0
    %v1486 = vsel %vm1484, 1, 0
    %1487 = vset.pattern.permute.xlu0 0
    %1488 = vperm.xlu0 %1487, %v1485
    %v1489 = vpop.permute.xlu0 %1488
    %1490 = vset.pattern.permute.xlu0 0
    %1491 = vperm.xlu0 %1490, %v1486
    %v1492 = vpop.permute.xlu0 %1491
    %vm1493 = vcmp.eq.s32.totalorder %v1489, 1
    %vm1494 = vcmp.eq.s32.totalorder %v1492, 1
    %v1495 = vsel %vm1493, %v1481, %v1348
    %v1496 = vsel %vm1494, %v1482, %v1349
    %v1497 = vsel %vm325, %v1495, 0.0
    %v1498 = vsel %vm326, %v1496, 0.0
    %v1499 = vsel %vm325, 0.0, %v1495
    %v1500 = vsel %vm326, 0.0, %v1496
    %1503 = vrot.lane.b32.xlu0 %v1497, 32
    %v1504 = vpop.permute.xlu0 %1503
    %1505 = vrot.lane.b32.xlu0 %v1498, 32
    %v1506 = vpop.permute.xlu0 %1505
    %1511 = vrot.lane.b32.xlu0 %v1499, 64
    %v1512 = vpop.permute.xlu0 %1511
    %1513 = vrot.lane.b32.xlu0 %v1500, 64
    %v1514 = vpop.permute.xlu0 %1513
    %v1517 = vsel %vm327, %v1504, %v1512
    %v1518 = vsel %vm327, %v1506, %v1514
    %v1519 = vld [vmem:[%s6] sm:$0xff]
    %v1520 = vld [vmem:[%s6 + $0x8] sm:$0xff]
    %v1521 = vld [vmem:[%s6 + $0x10] sm:$0xff]
    %v1522 = vld [vmem:[%s6 + $0x18] sm:$0xff]
    %v1523 = vld [vmem:[%s6 + $0x20] sm:$0xff]
    %v1524 = vld [vmem:[%s6 + $0x28] sm:$0xff]
    %v1525 = vld [vmem:[%s6 + $0x30] sm:$0xff]
    %v1526 = vld [vmem:[%s6 + $0x38] sm:$0xff]
    %v1528 = vsel %vm95, %v1517, 0
    %v1531 = vsel %vm95, %v1518, 0
    %1533 = vmatprep.subr.mxu0 0.0
    %1534 = vmatpush1.msra.mxu0 0.0
    %1535 = vmatprep.subr.mxu0 0.0
    %1536 = vmatpush1.msra.mxu0 0.0
    %1537 = vmatprep.subr.mxu0 0.0
    %1538 = vmatpush1.msra.mxu0 0.0
    %1539 = vmatprep.subr.mxu0 0.0
    %1540 = vmatpush1.msra.mxu0 0.0
    %1541 = vmatprep.subr.mxu0 0.0
    %1542 = vmatpush1.msra.mxu0 0.0
    %1543 = vmatprep.subr.mxu0 0.0
    %1544 = vmatpush1.msra.mxu0 0.0
    %1545 = vmatprep.subr.mxu0 0.0
    %1546 = vmatpush1.msra.mxu0 0.0
    %1547 = vmatprep.subr.mxu0 0.0
    %1548 = vmatpush1.msra.mxu0 0.0
    %1549 = vmatprep.subr.mxu0 0.0
    %1550 = vmatpush1.msra.mxu0 %v1526
    %1551 = vmatprep.subr.mxu0 0.0
    %1552 = vmatpush1.msra.mxu0 %v1525
    %1553 = vmatprep.subr.mxu0 0.0
    %1554 = vmatpush1.msra.mxu0 %v1524
    %1555 = vmatprep.subr.mxu0 0.0
    %1556 = vmatpush1.msra.mxu0 %v1523
    %1557 = vmatprep.subr.mxu0 0.0
    %1558 = vmatpush1.msra.mxu0 %v1522
    %1559 = vmatprep.subr.mxu0 0.0
    %1560 = vmatpush1.msra.mxu0 %v1521
    %1561 = vmatprep.subr.mxu0 0.0
    %1562 = vmatpush1.msra.mxu0 %v1520
    %1563 = vmatprep.subr.mxu0 0.0
    %1564 = vmatpush1.msra.mxu0 %v1519
    %1565 = vmatprep.subr.mxu0 0.0
    %1566 = vmatpush2.msra.mxu0 0.0
    %1567 = vmatprep.subr.mxu0 0.0
    %1568 = vmatpush2.msra.mxu0 0.0
    %1569 = vmatprep.subr.mxu0 0.0
    %1570 = vmatpush2.msra.mxu0 0.0
    %1571 = vmatprep.subr.mxu0 0.0
    %1572 = vmatpush2.msra.mxu0 0.0
    %1573 = vmatprep.subr.mxu0 0.0
    %1574 = vmatpush2.msra.mxu0 0.0
    %1575 = vmatprep.subr.mxu0 0.0
    %1576 = vmatpush2.msra.mxu0 0.0
    %1577 = vmatprep.subr.mxu0 0.0
    %1578 = vmatpush2.msra.mxu0 0.0
    %1579 = vmatprep.subr.mxu0 0.0
    %1580 = vmatpush2.msra.mxu0 0.0
    %1581 = vmatprep.subr.mxu0 0.0
    %1582 = vmatpush2.msra.mxu0 0.0
    %1583 = vmatprep.subr.mxu0 0.0
    %1584 = vmatpush2.msra.mxu0 0.0
    %1585 = vmatprep.subr.mxu0 0.0
    %1586 = vmatpush2.msra.mxu0 0.0
    %1587 = vmatprep.subr.mxu0 0.0
    %1588 = vmatpush2.msra.mxu0 0.0
    %1589 = vmatprep.subr.mxu0 0.0
    %1590 = vmatpush2.msra.mxu0 0.0
    %1591 = vmatprep.subr.mxu0 0.0
    %1592 = vmatpush2.msra.mxu0 0.0
    %1593 = vmatprep.subr.mxu0 0.0
    %1594 = vmatpush2.msra.mxu0 0.0
    %1595 = vmatprep.subr.mxu0 0.0
    %1596 = vmatpush2.msra.mxu0 0.0
    %1597 = vmatprep.mubr.f32.mxu0 0.0
    %1598 = vmatmul.mubr.f32.gmra.mxu0 %v1528
    %v1599 = vpop.f32.mrf.mxu0
    %v1600 = vadd.f32 0.0, %v1599
    %v1601 = vpop.f32.mrf.mxu0
    %1602 = vmatprep.mubr.f32.mxu0 0.0
    %1603 = vmatmul.mubr.f32.gmra.mxu0 %v1531
    %v1604 = vpop.f32.mrf.mxu0
    %v1605 = vadd.f32 0.0, %v1604
    %v1606 = vpop.f32.mrf.mxu0
    %1607 = vdwg.mxu0
    %v1608 = vld [vmem:[%s7] sm:$0x1]
    %v1610 = vlaneseq
    %v1611 = vshrl.u32 %v1610, 7
    %v1612 = vsub.s32 0, %v1611
    %v1613 = vrot.slane %v1608, %v1612
    %v1615 = vadd.f32 %v1600, %v1613
    %v1616 = vld [vmem:[%s2] sm:$0xff]
    %v1617 = vld [vmem:[%s2 + $0x8] sm:$0xff]
    %v1618 = vld [vmem:[%s11] sm:$0xff]
    %v1619 = vld [vmem:[%s11 + $0x8] sm:$0xff]
    %v1620 = vld [vmem:[%s11 + $0x10] sm:$0xff]
    %v1621 = vld [vmem:[%s11 + $0x18] sm:$0xff]
    %v1622 = vld [vmem:[%s11 + $0x20] sm:$0xff]
    %v1623 = vld [vmem:[%s11 + $0x28] sm:$0xff]
    %v1624 = vld [vmem:[%s11 + $0x30] sm:$0xff]
    %v1625 = vld [vmem:[%s11 + $0x38] sm:$0xff]
    %v1627 = vsel %vm95, %v1616, 0
    %v1630 = vsel %vm95, %v1617, 0
    %1632 = vmatprep.subr.mxu0 0.0
    %1633 = vmatpush1.msra.mxu0 0.0
    %1634 = vmatprep.subr.mxu0 0.0
    %1635 = vmatpush1.msra.mxu0 0.0
    %1636 = vmatprep.subr.mxu0 0.0
    %1637 = vmatpush1.msra.mxu0 0.0
    %1638 = vmatprep.subr.mxu0 0.0
    %1639 = vmatpush1.msra.mxu0 0.0
    %1640 = vmatprep.subr.mxu0 0.0
    %1641 = vmatpush1.msra.mxu0 0.0
    %1642 = vmatprep.subr.mxu0 0.0
    %1643 = vmatpush1.msra.mxu0 0.0
    %1644 = vmatprep.subr.mxu0 0.0
    %1645 = vmatpush1.msra.mxu0 0.0
    %1646 = vmatprep.subr.mxu0 0.0
    %1647 = vmatpush1.msra.mxu0 0.0
    %1648 = vmatprep.subr.mxu0 0.0
    %1649 = vmatpush1.msra.mxu0 %v1625
    %1650 = vmatprep.subr.mxu0 0.0
    %1651 = vmatpush1.msra.mxu0 %v1624
    %1652 = vmatprep.subr.mxu0 0.0
    %1653 = vmatpush1.msra.mxu0 %v1623
    %1654 = vmatprep.subr.mxu0 0.0
    %1655 = vmatpush1.msra.mxu0 %v1622
    %1656 = vmatprep.subr.mxu0 0.0
    %1657 = vmatpush1.msra.mxu0 %v1621
    %1658 = vmatprep.subr.mxu0 0.0
    %1659 = vmatpush1.msra.mxu0 %v1620
    %1660 = vmatprep.subr.mxu0 0.0
    %1661 = vmatpush1.msra.mxu0 %v1619
    %1662 = vmatprep.subr.mxu0 0.0
    %1663 = vmatpush1.msra.mxu0 %v1618
    %1664 = vmatprep.subr.mxu0 0.0
    %1665 = vmatpush2.msra.mxu0 0.0
    %1666 = vmatprep.subr.mxu0 0.0
    %1667 = vmatpush2.msra.mxu0 0.0
    %1668 = vmatprep.subr.mxu0 0.0
    %1669 = vmatpush2.msra.mxu0 0.0
    %1670 = vmatprep.subr.mxu0 0.0
    %1671 = vmatpush2.msra.mxu0 0.0
    %1672 = vmatprep.subr.mxu0 0.0
    %1673 = vmatpush2.msra.mxu0 0.0
    %1674 = vmatprep.subr.mxu0 0.0
    %1675 = vmatpush2.msra.mxu0 0.0
    %1676 = vmatprep.subr.mxu0 0.0
    %1677 = vmatpush2.msra.mxu0 0.0
    %1678 = vmatprep.subr.mxu0 0.0
    %1679 = vmatpush2.msra.mxu0 0.0
    %1680 = vmatprep.subr.mxu0 0.0
    %1681 = vmatpush2.msra.mxu0 0.0
    %1682 = vmatprep.subr.mxu0 0.0
    %1683 = vmatpush2.msra.mxu0 0.0
    %1684 = vmatprep.subr.mxu0 0.0
    %1685 = vmatpush2.msra.mxu0 0.0
    %1686 = vmatprep.subr.mxu0 0.0
    %1687 = vmatpush2.msra.mxu0 0.0
    %1688 = vmatprep.subr.mxu0 0.0
    %1689 = vmatpush2.msra.mxu0 0.0
    %1690 = vmatprep.subr.mxu0 0.0
    %1691 = vmatpush2.msra.mxu0 0.0
    %1692 = vmatprep.subr.mxu0 0.0
    %1693 = vmatpush2.msra.mxu0 0.0
    %1694 = vmatprep.subr.mxu0 0.0
    %1695 = vmatpush2.msra.mxu0 0.0
    %1696 = vmatprep.mubr.f32.mxu0 0.0
    %1697 = vmatmul.mubr.f32.gmra.mxu0 %v1627
    %v1698 = vpop.f32.mrf.mxu0
    %v1699 = vadd.f32 0.0, %v1698
    %v1700 = vpop.f32.mrf.mxu0
    %1701 = vmatprep.mubr.f32.mxu0 0.0
    %1702 = vmatmul.mubr.f32.gmra.mxu0 %v1630
    %v1703 = vpop.f32.mrf.mxu0
    %v1704 = vadd.f32 0.0, %v1703
    %v1705 = vpop.f32.mrf.mxu0
    %1706 = vdwg.mxu0
    %v1707 = vld [vmem:[%s8] sm:$0x1]
    %v1709 = vlaneseq
    %v1710 = vshrl.u32 %v1709, 7
    %v1711 = vsub.s32 0, %v1710
    %v1712 = vrot.slane %v1707, %v1711
    %v1714 = vadd.f32 %v1600, %v1712
    %v1715 = vadd.f32 %v1605, %v1712
    %v1716 = vld [vmem:[%s15] sm:$0xff]
    %vm1717 = vcmask 15360
    %v1719 = vsel %vm1717, %v1716, 0
    %vm1721 = vcmask 1041408
    %v1723 = vsel %vm1721, %v1615, 0
    %1725 = vmatprep.subr.mxu0 0.0
    %1726 = vmatpush1.msra.mxu0 0.0
    %1727 = vmatprep.subr.mxu0 0.0
    %1728 = vmatpush1.msra.mxu0 0.0
    %1729 = vmatprep.subr.mxu0 0.0
    %1730 = vmatpush1.msra.mxu0 0.0
    %1731 = vmatprep.subr.mxu0 0.0
    %1732 = vmatpush1.msra.mxu0 0.0
    %1733 = vmatprep.subr.mxu0 0.0
    %1734 = vmatpush1.msra.mxu0 0.0
    %1735 = vmatprep.subr.mxu0 0.0
    %1736 = vmatpush1.msra.mxu0 0.0
    %1737 = vmatprep.subr.mxu0 0.0
    %1738 = vmatpush1.msra.mxu0 0.0
    %1739 = vmatprep.subr.mxu0 0.0
    %1740 = vmatpush1.msra.mxu0 0.0
    %1741 = vmatprep.subr.mxu0 0.0
    %1742 = vmatpush1.msra.mxu0 0.0
    %1743 = vmatprep.subr.mxu0 0.0
    %1744 = vmatpush1.msra.mxu0 0.0
    %1745 = vmatprep.subr.mxu0 0.0
    %1746 = vmatpush1.msra.mxu0 0.0
    %1747 = vmatprep.subr.mxu0 0.0
    %1748 = vmatpush1.msra.mxu0 0.0
    %1749 = vmatprep.subr.mxu0 0.0
    %1750 = vmatpush1.msra.mxu0 0.0
    %1751 = vmatprep.subr.mxu0 0.0
    %1752 = vmatpush1.msra.mxu0 0.0
    %1753 = vmatprep.subr.mxu0 0.0
    %1754 = vmatpush1.msra.mxu0 0.0
    %1755 = vmatprep.subr.mxu0 0.0
    %1756 = vmatpush1.msra.mxu0 %v1723
    %1757 = vmatprep.subr.mxu0 0.0
    %1758 = vmatpush2.msra.mxu0 0.0
    %1759 = vmatprep.subr.mxu0 0.0
    %1760 = vmatpush2.msra.mxu0 0.0
    %1761 = vmatprep.subr.mxu0 0.0
    %1762 = vmatpush2.msra.mxu0 0.0
    %1763 = vmatprep.subr.mxu0 0.0
    %1764 = vmatpush2.msra.mxu0 0.0
    %1765 = vmatprep.subr.mxu0 0.0
    %1766 = vmatpush2.msra.mxu0 0.0
    %1767 = vmatprep.subr.mxu0 0.0
    %1768 = vmatpush2.msra.mxu0 0.0
    %1769 = vmatprep.subr.mxu0 0.0
    %1770 = vmatpush2.msra.mxu0 0.0
    %1771 = vmatprep.subr.mxu0 0.0
    %1772 = vmatpush2.msra.mxu0 0.0
    %1773 = vmatprep.subr.mxu0 0.0
    %1774 = vmatpush2.msra.mxu0 0.0
    %1775 = vmatprep.subr.mxu0 0.0
    %1776 = vmatpush2.msra.mxu0 0.0
    %1777 = vmatprep.subr.mxu0 0.0
    %1778 = vmatpush2.msra.mxu0 0.0
    %1779 = vmatprep.subr.mxu0 0.0
    %1780 = vmatpush2.msra.mxu0 0.0
    %1781 = vmatprep.subr.mxu0 0.0
    %1782 = vmatpush2.msra.mxu0 0.0
    %1783 = vmatprep.subr.mxu0 0.0
    %1784 = vmatpush2.msra.mxu0 0.0
    %1785 = vmatprep.subr.mxu0 0.0
    %1786 = vmatpush2.msra.mxu0 0.0
    %1787 = vmatprep.subr.mxu0 0.0
    %1788 = vmatpush2.msra.mxu0 0.0
    %1789 = vmatprep.mubr.f32.mxu0 0.0
    %1790 = vmatmul.mubr.f32.gmra.mxu0 %v1719
    %v1791 = vpop.f32.mrf.mxu0
    %v1792 = vadd.f32 0.0, %v1791
    %v1793 = vpop.f32.mrf.mxu0
    %1794 = vdwg.mxu0
    %v1796 = vrot.slane %v1792, 6
    %v1798 = vadd.f32 %v1714, %v1796
    %v1799 = vadd.f32 %v1715, %v1796
    %v1800 = vtanh.pop %v1798
    %v1801 = vtanh.pop %v1799
    %v1802 = vld [vmem:[%s10] sm:$0x1]
    %v1804 = vlaneseq
    %v1805 = vshrl.u32 %v1804, 7
    %v1806 = vsub.s32 0, %v1805
    %v1807 = vrot.slane %v1802, %v1806
    %v1809 = vmul.f32 %v1800, %v1807
    %v1810 = vmul.f32 %v1801, %v1807
    %vm1811 = vcmask 261122
    %v1812 = vsel %vm1811, %v1809, 0.0
    %1813 = vadd.xlane.f32.xlu0 %v1812
    %v1814 = vpop.xlane.xlu0 %1813
    %vm1815 = vcmask 254976
    %v1816 = vsel %vm1815, %v1810, 0.0
    %1817 = vadd.xlane.f32.xlu0 %v1816
    %v1818 = vpop.xlane.xlu0 %1817
    %s1819 = sld [smem:[#allocation2]]
    %v1820 = vstv %s1819
    %v1821 = vadd.f32 %v1814, %v1820
    %v1822 = vadd.f32 %v1818, %v1820
    %vm1823 = vcmask 1047554
    %v1824 = vsel %vm1823, %v1821, -inf
    %v1825 = vsel %vm1721, %v1822, -inf
    %v1826 = vmax.f32 %v1824, %v1825
    %v1827 = vrot.slane %v1826, 4
    %v1828 = vmax.f32 %v1826, %v1827
    %v1829 = vrot.slane %v1828, 2
    %v1830 = vmax.f32 %v1828, %v1829
    %v1831 = vrot.slane %v1830, 1
    %v1832 = vmax.f32 %v1830, %v1831
    %s1833 = vtos %v1832
    %v1834 = vstv %s1833
    %v1835 = vsub.f32 %v1821, %v1834
    %v1836 = vsub.f32 %v1822, %v1834
    %v1837 = vmul.f32 %v1835, 1.442695
    %v1838 = vpow.pop %v1837
    %v1839 = vmul.f32 %v1836, 1.442695
    %v1840 = vpow.pop %v1839
    %v1841 = vld [vmem:[%s16] sm:$0x3]
    %v1842 = vmul.f32 %v1838, %v1600
    %v1843 = vmul.f32 %v1840, %v1605
    %vm1846 = vcmask 1045504
    %v1847 = vrot.slane %v1842, 2
    %v1848 = vrot.slane %v1843, 2
    %v1849 = vsel %vm1846, %v1847, %v1848
    %1850 = vrot.lane.b32.xlu0 %v1849, 96
    %v1851 = vpop.permute.xlu0 %1850
    %vm1853 = vcmask 64512
    %v1855 = vsel %vm1853, %v1841, 0
    %1857 = vmatprep.subr.mxu0 0.0
    %1858 = vmatpush1.msra.mxu0 0.0
    %1859 = vmatprep.subr.mxu0 0.0
    %1860 = vmatpush1.msra.mxu0 0.0
    %1861 = vmatprep.subr.mxu0 0.0
    %1862 = vmatpush1.msra.mxu0 0.0
    %1863 = vmatprep.subr.mxu0 0.0
    %1864 = vmatpush1.msra.mxu0 0.0
    %1865 = vmatprep.subr.mxu0 0.0
    %1866 = vmatpush1.msra.mxu0 0.0
    %1867 = vmatprep.subr.mxu0 0.0
    %1868 = vmatpush1.msra.mxu0 0.0
    %1869 = vmatprep.subr.mxu0 0.0
    %1870 = vmatpush1.msra.mxu0 0.0
    %1871 = vmatprep.subr.mxu0 0.0
    %1872 = vmatpush1.msra.mxu0 0.0
    %1873 = vmatprep.subr.mxu0 0.0
    %1874 = vmatpush1.msra.mxu0 0.0
    %1875 = vmatprep.subr.mxu0 0.0
    %1876 = vmatpush1.msra.mxu0 0.0
    %1877 = vmatprep.subr.mxu0 0.0
    %1878 = vmatpush1.msra.mxu0 0.0
    %1879 = vmatprep.subr.mxu0 0.0
    %1880 = vmatpush1.msra.mxu0 0.0
    %1881 = vmatprep.subr.mxu0 0.0
    %1882 = vmatpush1.msra.mxu0 0.0
    %1883 = vmatprep.subr.mxu0 0.0
    %1884 = vmatpush1.msra.mxu0 0.0
    %1885 = vmatprep.subr.mxu0 0.0
    %1886 = vmatpush1.msra.mxu0 0.0
    %1887 = vmatprep.subr.mxu0 0.0
    %1888 = vmatpush1.msra.mxu0 %v1851
    %1889 = vmatprep.subr.mxu0 0.0
    %1890 = vmatpush2.msra.mxu0 0.0
    %1891 = vmatprep.subr.mxu0 0.0
    %1892 = vmatpush2.msra.mxu0 0.0
    %1893 = vmatprep.subr.mxu0 0.0
    %1894 = vmatpush2.msra.mxu0 0.0
    %1895 = vmatprep.subr.mxu0 0.0
    %1896 = vmatpush2.msra.mxu0 0.0
    %1897 = vmatprep.subr.mxu0 0.0
    %1898 = vmatpush2.msra.mxu0 0.0
    %1899 = vmatprep.subr.mxu0 0.0
    %1900 = vmatpush2.msra.mxu0 0.0
    %1901 = vmatprep.subr.mxu0 0.0
    %1902 = vmatpush2.msra.mxu0 0.0
    %1903 = vmatprep.subr.mxu0 0.0
    %1904 = vmatpush2.msra.mxu0 0.0
    %1905 = vmatprep.subr.mxu0 0.0
    %1906 = vmatpush2.msra.mxu0 0.0
    %1907 = vmatprep.subr.mxu0 0.0
    %1908 = vmatpush2.msra.mxu0 0.0
    %1909 = vmatprep.subr.mxu0 0.0
    %1910 = vmatpush2.msra.mxu0 0.0
    %1911 = vmatprep.subr.mxu0 0.0
    %1912 = vmatpush2.msra.mxu0 0.0
    %1913 = vmatprep.subr.mxu0 0.0
    %1914 = vmatpush2.msra.mxu0 0.0
    %1915 = vmatprep.subr.mxu0 0.0
    %1916 = vmatpush2.msra.mxu0 0.0
    %1917 = vmatprep.subr.mxu0 0.0
    %1918 = vmatpush2.msra.mxu0 0.0
    %1919 = vmatprep.subr.mxu0 0.0
    %1920 = vmatpush2.msra.mxu0 0.0
    %1921 = vmatprep.mubr.f32.mxu0 0.0
    %1922 = vmatmul.mubr.f32.gmra.mxu0 %v1855
    %v1923 = vpop.f32.mrf.mxu0
    %v1924 = vadd.f32 0.0, %v1923
    %v1925 = vpop.f32.mrf.mxu0
    %1926 = vdwg.mxu0
    %v1929 = vrot.slane %v1838, 2
    %v1930 = vrot.slane %v1840, 2
    %v1931 = vsel %vm1846, %v1929, %v1930
    %1933 = vmatprep.subr.mxu0 0.0
    %1934 = vmatpush1.msra.mxu0 0.0
    %1935 = vmatprep.subr.mxu0 0.0
    %1936 = vmatpush1.msra.mxu0 0.0
    %1937 = vmatprep.subr.mxu0 0.0
    %1938 = vmatpush1.msra.mxu0 0.0
    %1939 = vmatprep.subr.mxu0 0.0
    %1940 = vmatpush1.msra.mxu0 0.0
    %1941 = vmatprep.subr.mxu0 0.0
    %1942 = vmatpush1.msra.mxu0 0.0
    %1943 = vmatprep.subr.mxu0 0.0
    %1944 = vmatpush1.msra.mxu0 0.0
    %1945 = vmatprep.subr.mxu0 0.0
    %1946 = vmatpush1.msra.mxu0 0.0
    %1947 = vmatprep.subr.mxu0 0.0
    %1948 = vmatpush1.msra.mxu0 0.0
    %1949 = vmatprep.subr.mxu0 0.0
    %1950 = vmatpush1.msra.mxu0 0.0
    %1951 = vmatprep.subr.mxu0 0.0
    %1952 = vmatpush1.msra.mxu0 0.0
    %1953 = vmatprep.subr.mxu0 0.0
    %1954 = vmatpush1.msra.mxu0 0.0
    %1955 = vmatprep.subr.mxu0 0.0
    %1956 = vmatpush1.msra.mxu0 0.0
    %1957 = vmatprep.subr.mxu0 0.0
    %1958 = vmatpush1.msra.mxu0 0.0
    %1959 = vmatprep.subr.mxu0 0.0
    %1960 = vmatpush1.msra.mxu0 0.0
    %1961 = vmatprep.subr.mxu0 0.0
    %1962 = vmatpush1.msra.mxu0 0.0
    %1963 = vmatprep.subr.mxu0 0.0
    %1964 = vmatpush1.msra.mxu0 %v1931
    %1965 = vmatprep.subr.mxu0 0.0
    %1966 = vmatpush2.msra.mxu0 0.0
    %1967 = vmatprep.subr.mxu0 0.0
    %1968 = vmatpush2.msra.mxu0 0.0
    %1969 = vmatprep.subr.mxu0 0.0
    %1970 = vmatpush2.msra.mxu0 0.0
    %1971 = vmatprep.subr.mxu0 0.0
    %1972 = vmatpush2.msra.mxu0 0.0
    %1973 = vmatprep.subr.mxu0 0.0
    %1974 = vmatpush2.msra.mxu0 0.0
    %1975 = vmatprep.subr.mxu0 0.0
    %1976 = vmatpush2.msra.mxu0 0.0
    %1977 = vmatprep.subr.mxu0 0.0
    %1978 = vmatpush2.msra.mxu0 0.0
    %1979 = vmatprep.subr.mxu0 0.0
    %1980 = vmatpush2.msra.mxu0 0.0
    %1981 = vmatprep.subr.mxu0 0.0
    %1982 = vmatpush2.msra.mxu0 0.0
    %1983 = vmatprep.subr.mxu0 0.0
    %1984 = vmatpush2.msra.mxu0 0.0
    %1985 = vmatprep.subr.mxu0 0.0
    %1986 = vmatpush2.msra.mxu0 0.0
    %1987 = vmatprep.subr.mxu0 0.0
    %1988 = vmatpush2.msra.mxu0 0.0
    %1989 = vmatprep.subr.mxu0 0.0
    %1990 = vmatpush2.msra.mxu0 0.0
    %1991 = vmatprep.subr.mxu0 0.0
    %1992 = vmatpush2.msra.mxu0 0.0
    %1993 = vmatprep.subr.mxu0 0.0
    %1994 = vmatpush2.msra.mxu0 0.0
    %1995 = vmatprep.subr.mxu0 0.0
    %1996 = vmatpush2.msra.mxu0 0.0
    %1997 = vmatprep.mubr.f32.mxu0 0.0
    %1998 = vmatmul.mubr.f32.gmra.mxu0 %v1855
    %v1999 = vpop.f32.mrf.mxu0
    %v2000 = vadd.f32 0.0, %v1999
    %v2001 = vpop.f32.mrf.mxu0
    %2002 = vdwg.mxu0
    %v2003 = vrcp.pop %v2000
    %v2004 = vmul.f32 1.0, %v2003
    %v2005 = vmul.f32 %v1924, %v2004
    %v2006 = vld [vmem:[%s9] sm:$0x1]
    %v2008 = vlaneseq
    %v2009 = vshrl.u32 %v2008, 7
    %v2010 = vsub.s32 0, %v2009
    %v2011 = vrot.slane %v2006, %v2010
    %v2013 = vadd.f32 %v2005, %v2011
    %2015 = vrot.lane.b32.xlu0 %v2004, 32
    %v2016 = vpop.permute.xlu0 %2015
    %v2018 = vmul.f32 %v1924, %v2016
    %v2019 = vld [vmem:[%s12] sm:$0x1]
    %v2021 = vlaneseq
    %v2022 = vshrl.u32 %v2021, 7
    %v2023 = vsub.s32 0, %v2022
    %v2024 = vrot.slane %v2019, %v2023
    %v2026 = vadd.f32 %v1699, %v2024
    %v2027 = vadd.f32 %v1704, %v2024
    %v2028 = vld [vmem:[%s17] sm:$0xff]
    %v2029 = vld [vmem:[%s17 + $0x8] sm:$0xff]
    %2031 = vrot.lane.b32.xlu0 %v2013, 32
    %v2032 = vpop.permute.xlu0 %2031
    %v2034 = vadd.f32 %v1615, %v2032
    %2036 = vrot.lane.b32.xlu0 %v2034, 96
    %v2037 = vpop.permute.xlu0 %2036
    %v2039 = vsel %vm1717, %v2028, 0
    %v2042 = vsel %vm1717, %v2029, 0
    %v2044 = vsel %vm1721, %v2037, 0
    %2046 = vmatprep.subr.mxu0 0.0
    %2047 = vmatpush1.msra.mxu0 0.0
    %2048 = vmatprep.subr.mxu0 0.0
    %2049 = vmatpush1.msra.mxu0 0.0
    %2050 = vmatprep.subr.mxu0 0.0
    %2051 = vmatpush1.msra.mxu0 0.0
    %2052 = vmatprep.subr.mxu0 0.0
    %2053 = vmatpush1.msra.mxu0 0.0
    %2054 = vmatprep.subr.mxu0 0.0
    %2055 = vmatpush1.msra.mxu0 0.0
    %2056 = vmatprep.subr.mxu0 0.0
    %2057 = vmatpush1.msra.mxu0 0.0
    %2058 = vmatprep.subr.mxu0 0.0
    %2059 = vmatpush1.msra.mxu0 0.0
    %2060 = vmatprep.subr.mxu0 0.0
    %2061 = vmatpush1.msra.mxu0 0.0
    %2062 = vmatprep.subr.mxu0 0.0
    %2063 = vmatpush1.msra.mxu0 0.0
    %2064 = vmatprep.subr.mxu0 0.0
    %2065 = vmatpush1.msra.mxu0 0.0
    %2066 = vmatprep.subr.mxu0 0.0
    %2067 = vmatpush1.msra.mxu0 0.0
    %2068 = vmatprep.subr.mxu0 0.0
    %2069 = vmatpush1.msra.mxu0 0.0
    %2070 = vmatprep.subr.mxu0 0.0
    %2071 = vmatpush1.msra.mxu0 0.0
    %2072 = vmatprep.subr.mxu0 0.0
    %2073 = vmatpush1.msra.mxu0 0.0
    %2074 = vmatprep.subr.mxu0 0.0
    %2075 = vmatpush1.msra.mxu0 0.0
    %2076 = vmatprep.subr.mxu0 0.0
    %2077 = vmatpush1.msra.mxu0 %v2044
    %2078 = vmatprep.subr.mxu0 0.0
    %2079 = vmatpush2.msra.mxu0 0.0
    %2080 = vmatprep.subr.mxu0 0.0
    %2081 = vmatpush2.msra.mxu0 0.0
    %2082 = vmatprep.subr.mxu0 0.0
    %2083 = vmatpush2.msra.mxu0 0.0
    %2084 = vmatprep.subr.mxu0 0.0
    %2085 = vmatpush2.msra.mxu0 0.0
    %2086 = vmatprep.subr.mxu0 0.0
    %2087 = vmatpush2.msra.mxu0 0.0
    %2088 = vmatprep.subr.mxu0 0.0
    %2089 = vmatpush2.msra.mxu0 0.0
    %2090 = vmatprep.subr.mxu0 0.0
    %2091 = vmatpush2.msra.mxu0 0.0
    %2092 = vmatprep.subr.mxu0 0.0
    %2093 = vmatpush2.msra.mxu0 0.0
    %2094 = vmatprep.subr.mxu0 0.0
    %2095 = vmatpush2.msra.mxu0 0.0
    %2096 = vmatprep.subr.mxu0 0.0
    %2097 = vmatpush2.msra.mxu0 0.0
    %2098 = vmatprep.subr.mxu0 0.0
    %2099 = vmatpush2.msra.mxu0 0.0
    %2100 = vmatprep.subr.mxu0 0.0
    %2101 = vmatpush2.msra.mxu0 0.0
    %2102 = vmatprep.subr.mxu0 0.0
    %2103 = vmatpush2.msra.mxu0 0.0
    %2104 = vmatprep.subr.mxu0 0.0
    %2105 = vmatpush2.msra.mxu0 0.0
    %2106 = vmatprep.subr.mxu0 0.0
    %2107 = vmatpush2.msra.mxu0 0.0
    %2108 = vmatprep.subr.mxu0 0.0
    %2109 = vmatpush2.msra.mxu0 0.0
    %2110 = vmatprep.mubr.f32.mxu0 0.0
    %2111 = vmatmul.mubr.f32.gmra.mxu0 %v2039
    %v2112 = vpop.f32.mrf.mxu0
    %v2113 = vadd.f32 0.0, %v2112
    %v2114 = vpop.f32.mrf.mxu0
    %2115 = vmatprep.mubr.f32.mxu0 0.0
    %2116 = vmatmul.mubr.f32.gmra.mxu0 %v2042
    %v2117 = vpop.f32.mrf.mxu0
    %v2118 = vadd.f32 0.0, %v2117
    %v2119 = vpop.f32.mrf.mxu0
    %2120 = vdwg.mxu0
    %v2121 = vadd.f32 %v2026, %v2113
    %v2122 = vadd.f32 %v2027, %v2118
    %v2123 = vtanh.pop %v2121
    %v2124 = vtanh.pop %v2122
    %v2125 = vld [vmem:[%s13] sm:$0x1]
    %v2127 = vlaneseq
    %v2128 = vshrl.u32 %v2127, 7
    %v2129 = vsub.s32 0, %v2128
    %v2130 = vrot.slane %v2125, %v2129
    %v2132 = vmul.f32 %v2123, %v2130
    %v2133 = vmul.f32 %v2124, %v2130
    %v2134 = vsel %vm327, %v2132, 0.0
    %2135 = vadd.xlane.f32.xlu0 %v2134
    %v2136 = vpop.xlane.xlu0 %2135
    %v2137 = vsel %vm327, %v2133, 0.0
    %2138 = vadd.xlane.f32.xlu0 %v2137
    %v2139 = vpop.xlane.xlu0 %2138
    %s2140 = sld [smem:[#allocation3]]
    %v2141 = vstv %s2140
    %v2142 = vadd.f32 %v2136, %v2141
    %v2143 = vadd.f32 %v2139, %v2141
    %v2144 = vmax.f32 %v2142, %v2143
    %v2145 = vrot.slane %v2144, 4
    %v2146 = vmax.f32 %v2144, %v2145
    %v2147 = vrot.slane %v2146, 2
    %v2148 = vmax.f32 %v2146, %v2147
    %v2149 = vrot.slane %v2148, 1
    %v2150 = vmax.f32 %v2148, %v2149
    %s2151 = vtos %v2150
    %v2152 = vstv %s2151
    %v2153 = vsub.f32 %v2142, %v2152
    %v2154 = vsub.f32 %v2143, %v2152
    %v2155 = vmul.f32 %v2153, 1.442695
    %v2156 = vpow.pop %v2155
    %v2157 = vmul.f32 %v2154, 1.442695
    %v2158 = vpow.pop %v2157
    %v2159 = vld [vmem:[%s18] sm:$0x3]
    %v2160 = vmul.f32 %v2156, %v1699
    %v2161 = vmul.f32 %v2158, %v1704
    %2164 = vrot.lane.b32.xlu0 %v2160, 96
    %v2165 = vpop.permute.xlu0 %2164
    %2166 = vrot.lane.b32.xlu0 %v2161, 96
    %v2167 = vpop.permute.xlu0 %2166
    %vm2170 = vcmask 130048
    %v2172 = vsel %vm2170, %v2159, 0
    %2174 = vmatprep.subr.mxu0 0.0
    %2175 = vmatpush1.msra.mxu0 0.0
    %2176 = vmatprep.subr.mxu0 0.0
    %2177 = vmatpush1.msra.mxu0 0.0
    %2178 = vmatprep.subr.mxu0 0.0
    %2179 = vmatpush1.msra.mxu0 0.0
    %2180 = vmatprep.subr.mxu0 0.0
    %2181 = vmatpush1.msra.mxu0 0.0
    %2182 = vmatprep.subr.mxu0 0.0
    %2183 = vmatpush1.msra.mxu0 0.0
    %2184 = vmatprep.subr.mxu0 0.0
    %2185 = vmatpush1.msra.mxu0 0.0
    %2186 = vmatprep.subr.mxu0 0.0
    %2187 = vmatpush1.msra.mxu0 0.0
    %2188 = vmatprep.subr.mxu0 0.0
    %2189 = vmatpush1.msra.mxu0 0.0
    %2190 = vmatprep.subr.mxu0 0.0
    %2191 = vmatpush1.msra.mxu0 0.0
    %2192 = vmatprep.subr.mxu0 0.0
    %2193 = vmatpush1.msra.mxu0 0.0
    %2194 = vmatprep.subr.mxu0 0.0
    %2195 = vmatpush1.msra.mxu0 0.0
    %2196 = vmatprep.subr.mxu0 0.0
    %2197 = vmatpush1.msra.mxu0 0.0
    %2198 = vmatprep.subr.mxu0 0.0
    %2199 = vmatpush1.msra.mxu0 0.0
    %2200 = vmatprep.subr.mxu0 0.0
    %2201 = vmatpush1.msra.mxu0 0.0
    %2202 = vmatprep.subr.mxu0 0.0
    %2203 = vmatpush1.msra.mxu0 %v2167
    %2204 = vmatprep.subr.mxu0 0.0
    %2205 = vmatpush1.msra.mxu0 %v2165
    %2206 = vmatprep.subr.mxu0 0.0
    %2207 = vmatpush2.msra.mxu0 0.0
    %2208 = vmatprep.subr.mxu0 0.0
    %2209 = vmatpush2.msra.mxu0 0.0
    %2210 = vmatprep.subr.mxu0 0.0
    %2211 = vmatpush2.msra.mxu0 0.0
    %2212 = vmatprep.subr.mxu0 0.0
    %2213 = vmatpush2.msra.mxu0 0.0
    %2214 = vmatprep.subr.mxu0 0.0
    %2215 = vmatpush2.msra.mxu0 0.0
    %2216 = vmatprep.subr.mxu0 0.0
    %2217 = vmatpush2.msra.mxu0 0.0
    %2218 = vmatprep.subr.mxu0 0.0
    %2219 = vmatpush2.msra.mxu0 0.0
    %2220 = vmatprep.subr.mxu0 0.0
    %2221 = vmatpush2.msra.mxu0 0.0
    %2222 = vmatprep.subr.mxu0 0.0
    %2223 = vmatpush2.msra.mxu0 0.0
    %2224 = vmatprep.subr.mxu0 0.0
    %2225 = vmatpush2.msra.mxu0 0.0
    %2226 = vmatprep.subr.mxu0 0.0
    %2227 = vmatpush2.msra.mxu0 0.0
    %2228 = vmatprep.subr.mxu0 0.0
    %2229 = vmatpush2.msra.mxu0 0.0
    %2230 = vmatprep.subr.mxu0 0.0
    %2231 = vmatpush2.msra.mxu0 0.0
    %2232 = vmatprep.subr.mxu0 0.0
    %2233 = vmatpush2.msra.mxu0 0.0
    %2234 = vmatprep.subr.mxu0 0.0
    %2235 = vmatpush2.msra.mxu0 0.0
    %2236 = vmatprep.subr.mxu0 0.0
    %2237 = vmatpush2.msra.mxu0 0.0
    %2238 = vmatprep.mubr.f32.mxu0 0.0
    %2239 = vmatmul.mubr.f32.gmra.mxu0 %v2172
    %v2240 = vpop.f32.mrf.mxu0
    %v2241 = vadd.f32 0.0, %v2240
    %v2242 = vpop.f32.mrf.mxu0
    %2243 = vdwg.mxu0
    %2244 = vmatprep.subr.mxu0 0.0
    %2245 = vmatpush1.msra.mxu0 0.0
    %2246 = vmatprep.subr.mxu0 0.0
    %2247 = vmatpush1.msra.mxu0 0.0
    %2248 = vmatprep.subr.mxu0 0.0
    %2249 = vmatpush1.msra.mxu0 0.0
    %2250 = vmatprep.subr.mxu0 0.0
    %2251 = vmatpush1.msra.mxu0 0.0
    %2252 = vmatprep.subr.mxu0 0.0
    %2253 = vmatpush1.msra.mxu0 0.0
    %2254 = vmatprep.subr.mxu0 0.0
    %2255 = vmatpush1.msra.mxu0 0.0
    %2256 = vmatprep.subr.mxu0 0.0
    %2257 = vmatpush1.msra.mxu0 0.0
    %2258 = vmatprep.subr.mxu0 0.0
    %2259 = vmatpush1.msra.mxu0 0.0
    %2260 = vmatprep.subr.mxu0 0.0
    %2261 = vmatpush1.msra.mxu0 0.0
    %2262 = vmatprep.subr.mxu0 0.0
    %2263 = vmatpush1.msra.mxu0 0.0
    %2264 = vmatprep.subr.mxu0 0.0
    %2265 = vmatpush1.msra.mxu0 0.0
    %2266 = vmatprep.subr.mxu0 0.0
    %2267 = vmatpush1.msra.mxu0 0.0
    %2268 = vmatprep.subr.mxu0 0.0
    %2269 = vmatpush1.msra.mxu0 0.0
    %2270 = vmatprep.subr.mxu0 0.0
    %2271 = vmatpush1.msra.mxu0 0.0
    %2272 = vmatprep.subr.mxu0 0.0
    %2273 = vmatpush1.msra.mxu0 %v2158
    %2274 = vmatprep.subr.mxu0 0.0
    %2275 = vmatpush1.msra.mxu0 %v2156
    %2276 = vmatprep.subr.mxu0 0.0
    %2277 = vmatpush2.msra.mxu0 0.0
    %2278 = vmatprep.subr.mxu0 0.0
    %2279 = vmatpush2.msra.mxu0 0.0
    %2280 = vmatprep.subr.mxu0 0.0
    %2281 = vmatpush2.msra.mxu0 0.0
    %2282 = vmatprep.subr.mxu0 0.0
    %2283 = vmatpush2.msra.mxu0 0.0
    %2284 = vmatprep.subr.mxu0 0.0
    %2285 = vmatpush2.msra.mxu0 0.0
    %2286 = vmatprep.subr.mxu0 0.0
    %2287 = vmatpush2.msra.mxu0 0.0
    %2288 = vmatprep.subr.mxu0 0.0
    %2289 = vmatpush2.msra.mxu0 0.0
    %2290 = vmatprep.subr.mxu0 0.0
    %2291 = vmatpush2.msra.mxu0 0.0
    %2292 = vmatprep.subr.mxu0 0.0
    %2293 = vmatpush2.msra.mxu0 0.0
    %2294 = vmatprep.subr.mxu0 0.0
    %2295 = vmatpush2.msra.mxu0 0.0
    %2296 = vmatprep.subr.mxu0 0.0
    %2297 = vmatpush2.msra.mxu0 0.0
    %2298 = vmatprep.subr.mxu0 0.0
    %2299 = vmatpush2.msra.mxu0 0.0
    %2300 = vmatprep.subr.mxu0 0.0
    %2301 = vmatpush2.msra.mxu0 0.0
    %2302 = vmatprep.subr.mxu0 0.0
    %2303 = vmatpush2.msra.mxu0 0.0
    %2304 = vmatprep.subr.mxu0 0.0
    %2305 = vmatpush2.msra.mxu0 0.0
    %2306 = vmatprep.subr.mxu0 0.0
    %2307 = vmatpush2.msra.mxu0 0.0
    %2308 = vmatprep.mubr.f32.mxu0 0.0
    %2309 = vmatmul.mubr.f32.gmra.mxu0 %v2172
    %v2310 = vpop.f32.mrf.mxu0
    %v2311 = vadd.f32 0.0, %v2310
    %v2312 = vpop.f32.mrf.mxu0
    %2313 = vdwg.mxu0
    %v2314 = vrcp.pop %v2311
    %v2315 = vmul.f32 1.0, %v2314
    %v2316 = vmul.f32 %v2241, %v2315
    %2318 = vrot.lane.b32.xlu0 %v2018, 32
    %v2319 = vpop.permute.xlu0 %2318
    %v2321 = vadd.f32 %v1615, %v2319
    %2323 = vrot.lane.b32.xlu0 %v2316, 64
    %v2324 = vpop.permute.xlu0 %2323
    %v2326 = vadd.f32 %v2321, %v2324
    %v2327 = vld [vmem:[%s14] sm:$0x1]
    %v2329 = vlaneseq
    %v2330 = vshrl.u32 %v2329, 7
    %v2331 = vsub.s32 0, %v2330
    %v2332 = vrot.slane %v2327, %v2331
    %2333 = vrot.lane.b32.xlu0 %v2332, 64
    %v2334 = vpop.permute.xlu0 %2333
    %v2336 = vadd.f32 %v2326, %v2334
    %v2337 = vtanh.pop %v2336
    %2339 = vrot.lane.b32.xlu0 %v2337, 64
    %v2340 = vpop.permute.xlu0 %2339
    %2342 = vst.msk [vmem:[#allocation4] sm:$0x3] %vm1815, %v2340
    // Predicated region
    $region86: #{hciae_forward.1} parent=1 // pred_check
      _
    $region87: #{hciae_forward.1} parent=1 // pred_check_branch
      %2344 = sbr.rel (0) target = $region89
    $region88: #{hciae_forward.1} parent=1 // pred_region
      %s2346 = ssub.s32 32, 32
      %2347 = vsyncadd [#allocation5], %s2346
      %s2349 = sshll.u32 [#allocation4], 4
      %s2350 = int_to_ptr.vmem [resolvable:$true] %s2349
      %2352 = dma.vmem_to_hbm [thread:$0]  %s2350, 32, %s21, [#allocation5]
    $region89: #{hciae_forward.1} parent=1 // pred_fallthru
      _
    // Predicated region
    $region90: #{hciae_forward.1} parent=1 // pred_check
      _
    $region91: #{hciae_forward.1} parent=1 // pred_check_branch
      %2354 = sbr.rel (0) target = $region93
    $region92: #{hciae_forward.1} parent=1 // pred_region
      %2355 = dma.done [#allocation5], 32
    $region93: #{hciae_forward.1} parent=1 // pred_fallthru
      _
    %2356 = vsyncpa [#allocation5], 1

</llo_original>
